<compile_context>
chip_gen: v5e
topology: v5e:2x2
jax: 0.10.0
libtpu: 0.0.40
codegen_flags: <defaults>
</compile_context>

<pallas_src>
import jax
import jax.numpy as jnp
from jax.experimental import pallas as pl
from jax.experimental.pallas import tpu as pltpu

# ------------------------- model hyper-parameters --------------------------
VOCAB = 20
EMB_DIM = 32
H1, H2 = 50, 10          # true LSTM hidden sizes (PyTorch module)
G1 = 64                  # lane-padded per-gate width, layer 1 (50 -> 64)
G2 = 32                  # lane-padded per-gate width, layer 2 (10 -> 32)
FP = 32                  # fc1 output padded width (10 -> 32)
OUTP = 128               # fc2 output padded width (1 -> 128)


def _sigmoid(x):
    # sigmoid(x) == 0.5 * tanh(x/2) + 0.5 : tanh goes to the EUP slot,
    # avoiding the VALU Newton-iteration divide of 1/(1+exp(-x)).
    return 0.5 * jnp.tanh(0.5 * x) + 0.5


# ------------------------------- kernel ------------------------------------
def text_model_kernel(lm1_ref, emb_ref,
                      w1x_ref, b1_ref, w1h_ref,
                      w2x_ref, w2h_ref, b2_ref,
                      wf1_ref, bf1_ref, wf2_ref, bf2_ref,
                      out_ref,
                      x1_ref):
    """Fused 2-layer LSTM + last-step gather + MLP head.

    lm1_ref : (B, 1)   int32   lengths - 1
    emb_ref : (T*B, E) f32     time-major embedded tokens (row = t*B + b)
    w1x_ref : (E,  4*G1)   b1_ref : (1, 4*G1)   w1h_ref : (G1, 4*G1)
    w2x_ref : (G1, 4*G2)   w2h_ref : (G2, 4*G2) b2_ref  : (1, 4*G2)
    wf1_ref : (G2, FP)     bf1_ref : (1, FP)
    wf2_ref : (FP, OUTP)   bf2_ref : (1, OUTP)
    out_ref : (B, OUTP)    (only column 0 is meaningful)
    x1_ref  : (T*B, 4*G1)  scratch for the hoisted layer-1 input projection
    """
    B = out_ref.shape[0]
    TB = emb_ref.shape[0]
    T = TB // B
    f32 = jnp.float32

    # ---- hoisted layer-1 x-projection: one matmul, off the serial chain ----
    x1_ref[...] = (jnp.dot(emb_ref[...], w1x_ref[...],
                           preferred_element_type=f32) + b1_ref[...])

    lm1 = lm1_ref[...]                      # (B, 1) int32
    b2 = b2_ref[...]                        # (1, 4*G2)

    h1 = jnp.zeros((B, G1), f32)
    c1 = jnp.zeros((B, G1), f32)
    h2 = jnp.zeros((B, G2), f32)
    c2 = jnp.zeros((B, G2), f32)
    last = jnp.zeros((B, G2), f32)

    # Fully unrolled recurrence: T is small and static.
    for t in range(T):
        # ---- LSTM layer 1 (PyTorch gate order i, f, g, o) ----
        g1 = x1_ref[pl.ds(t * B, B), :] + jnp.dot(
            h1, w1h_ref[...], preferred_element_type=f32)       # (B, 4*G1)
        i1 = _sigmoid(g1[:, 0 * G1:1 * G1])
        f1 = _sigmoid(g1[:, 1 * G1:2 * G1])
        gg1 = jnp.tanh(g1[:, 2 * G1:3 * G1])
        o1 = _sigmoid(g1[:, 3 * G1:4 * G1])
        c1 = f1 * c1 + i1 * gg1
        h1 = o1 * jnp.tanh(c1)

        # ---- LSTM layer 2 (h2-path matmul uses previous-step state, so the
        #      scheduler overlaps it with layer-1 work of this step) ----
        g2 = (jnp.dot(h1, w2x_ref[...], preferred_element_type=f32)
              + jnp.dot(h2, w2h_ref[...], preferred_element_type=f32)
              + b2)                                             # (B, 4*G2)
        i2 = _sigmoid(g2[:, 0 * G2:1 * G2])
        f2 = _sigmoid(g2[:, 1 * G2:2 * G2])
        gg2 = jnp.tanh(g2[:, 2 * G2:3 * G2])
        o2 = _sigmoid(g2[:, 3 * G2:4 * G2])
        c2 = f2 * c2 + i2 * gg2
        h2 = o2 * jnp.tanh(c2)

        # ---- pack_padded_sequence semantics: keep h2 at t == length-1 ----
        last = jnp.where(lm1 == t, h2, last)

    # ---- MLP head: fc1 -> relu -> fc2 (dropouts identity in eval) ----
    z = jnp.maximum(
        jnp.dot(last, wf1_ref[...], preferred_element_type=f32) + bf1_ref[...],
        0.0)
    out_ref[...] = (jnp.dot(z, wf2_ref[...], preferred_element_type=f32)
                    + bf2_ref[...])


# ------------------------------ wrapper -------------------------------------
def _pack_lstm(w_ih, w_hh, b_ih, b_hh, in_rows, gp):
    """Pack PyTorch LSTM params into lane-padded kernel matrices.

    w_ih: (4h, in_dim), w_hh: (4h, h), biases (4h,)  ->
      wx: (in_rows, 4*gp), wh: (gp, 4*gp), b: (1, 4*gp)
    Gate g lives in lane block [g*gp, g*gp + h); all padding is exactly zero,
    which keeps padded state lanes exactly zero through the recurrence.
    """
    h = w_hh.shape[1]
    in_dim = w_ih.shape[1]
    wx = jnp.zeros((in_rows, 4 * gp), jnp.float32)
    wh = jnp.zeros((gp, 4 * gp), jnp.float32)
    b = jnp.zeros((1, 4 * gp), jnp.float32)
    for g in range(4):
        wx = wx.at[:in_dim, g * gp:g * gp + h].set(w_ih[g * h:(g + 1) * h, :].T)
        wh = wh.at[:h, g * gp:g * gp + h].set(w_hh[g * h:(g + 1) * h, :].T)
        b = b.at[0, g * gp:g * gp + h].set(b_ih[g * h:(g + 1) * h]
                                           + b_hh[g * h:(g + 1) * h])
    return wx, wh, b


def text_model_forward(ids, lengths, p):
    """ids: (B, T) int32 token ids; lengths: (B,) int32 valid lengths (>= 1)."""
    B, T = ids.shape
    emb = p["embedding"][ids].astype(jnp.float32)               # (B, T, E) glue
    emb_tm = jnp.transpose(emb, (1, 0, 2)).reshape(T * B, EMB_DIM)  # row=t*B+b
    lm1 = (lengths - 1).astype(jnp.int32).reshape(B, 1)

    w1x, w1h, b1 = _pack_lstm(p["w_ih1"], p["w_hh1"], p["b_ih1"], p["b_hh1"],
                              EMB_DIM, G1)
    w2x, w2h, b2 = _pack_lstm(p["w_ih2"], p["w_hh2"], p["b_ih2"], p["b_hh2"],
                              G1, G2)

    wf1 = jnp.zeros((G2, FP), jnp.float32).at[:H2, :H2].set(p["w_fc1"].T)
    bf1 = jnp.zeros((1, FP), jnp.float32).at[0, :H2].set(p["b_fc1"])
    wf2 = jnp.zeros((FP, OUTP), jnp.float32).at[:H2, :1].set(p["w_fc2"].T)
    bf2 = jnp.zeros((1, OUTP), jnp.float32).at[0, :1].set(p["b_fc2"])

    vmem = pl.BlockSpec(memory_space=pltpu.MemorySpace.VMEM)
    out = pl.pallas_call(
        text_model_kernel,
        out_shape=jax.ShapeDtypeStruct((B, OUTP), jnp.float32),
        in_specs=[vmem] * 12,
        out_specs=vmem,
        scratch_shapes=[pltpu.VMEM((T * B, 4 * G1), jnp.float32)],  # hoisted x1
    )(lm1, emb_tm, w1x, b1, w1h, w2x, w2h, b2, wf1, bf1, wf2, bf2)
    return out[:, :1]                                           # (B, 1)


# ----------------------------- pure-JAX reference ---------------------------
def reference_forward(ids, lengths, p):
    B = ids.shape[0]
    emb = p["embedding"][ids]

    def run_lstm(xs, w_ih, w_hh, b_ih, b_hh, h):
        def step(carry, x_t):
            hh, cc = carry
            g = x_t @ w_ih.T + hh @ w_hh.T + b_ih + b_hh
            i, f, gg, o = jnp.split(g, 4, axis=-1)
            cc = jax.nn.sigmoid(f) * cc + jax.nn.sigmoid(i) * jnp.tanh(gg)
            hh = jax.nn.sigmoid(o) * jnp.tanh(cc)
            return (hh, cc), hh
        init = (jnp.zeros((B, h)), jnp.zeros((B, h)))
        _, hs = jax.lax.scan(step, init, jnp.swapaxes(xs, 0, 1))
        return jnp.swapaxes(hs, 0, 1)

    h1 = run_lstm(emb, p["w_ih1"], p["w_hh1"], p["b_ih1"], p["b_hh1"], H1)
    h2 = run_lstm(h1, p["w_ih2"], p["w_hh2"], p["b_ih2"], p["b_hh2"], H2)
    last = h2[jnp.arange(B), lengths - 1]
    z = jnp.maximum(last @ p["w_fc1"].T + p["b_fc1"], 0.0)
    return z @ p["w_fc2"].T + p["b_fc2"]


# --------------------------------- main --------------------------------------
if __name__ == "__main__":
    key = jax.random.PRNGKey(0)
    ks = jax.random.split(key, 16)

    def rnd(k, shape, scale=0.1):
        return (scale * jax.random.normal(k, shape)).astype(jnp.float32)

    params = {
        "embedding": rnd(ks[0], (VOCAB, EMB_DIM), 1.0),
        # lstm1: EMB_DIM -> 50
        "w_ih1": rnd(ks[1], (4 * H1, EMB_DIM)),
        "w_hh1": rnd(ks[2], (4 * H1, H1)),
        "b_ih1": rnd(ks[3], (4 * H1,)),
        "b_hh1": rnd(ks[4], (4 * H1,)),
        # lstm2: 50 -> 10
        "w_ih2": rnd(ks[5], (4 * H2, H1)),
        "w_hh2": rnd(ks[6], (4 * H2, H2)),
        "b_ih2": rnd(ks[7], (4 * H2,)),
        "b_hh2": rnd(ks[8], (4 * H2,)),
        # fc1: 10 -> 10, fc2: 10 -> 1
        "w_fc1": rnd(ks[9], (H2, H2)),
        "b_fc1": rnd(ks[10], (H2,)),
        "w_fc2": rnd(ks[11], (1, H2)),
        "b_fc2": rnd(ks[12], (1,)),
    }

    B, T = 4, 8
    ids = jax.random.randint(ks[13], (B, T), 0, VOCAB, dtype=jnp.int32)
    lengths = jnp.array([8, 5, 3, 6], dtype=jnp.int32)
    assert int(lengths.min()) >= 1  # pack_padded_sequence requires lengths >= 1

    out = text_model_forward(ids, lengths, params)
    out = jax.block_until_ready(out)

    ref = reference_forward(ids, lengths, params)
    assert out.shape == (B, 1), out.shape
    assert jnp.allclose(out, ref, atol=1e-4, rtol=1e-4), (out, ref)

    print("KERNEL_OK")
</pallas_src>

<mosaic_0001>
module attributes {stable_mosaic.version = 11 : i64} {
  func.func @text_model_kernel(%arg0: memref<4x1xi32, #tpu.memory_space<vmem>>, %arg1: memref<32x32xf32, #tpu.memory_space<vmem>>, %arg2: memref<32x256xf32, #tpu.memory_space<vmem>>, %arg3: memref<1x256xf32, #tpu.memory_space<vmem>>, %arg4: memref<64x256xf32, #tpu.memory_space<vmem>>, %arg5: memref<64x128xf32, #tpu.memory_space<vmem>>, %arg6: memref<32x128xf32, #tpu.memory_space<vmem>>, %arg7: memref<1x128xf32, #tpu.memory_space<vmem>>, %arg8: memref<32x32xf32, #tpu.memory_space<vmem>>, %arg9: memref<1x32xf32, #tpu.memory_space<vmem>>, %arg10: memref<32x128xf32, #tpu.memory_space<vmem>>, %arg11: memref<1x128xf32, #tpu.memory_space<vmem>>, %arg12: memref<4x128xf32, #tpu.memory_space<vmem>>, %arg13: memref<32x256xf32, #tpu.memory_space<vmem>>) attributes {dimension_semantics = [], scalar_prefetch = 0 : i64, scratch_operands = 1 : i64, tpu.core_type = #tpu.core_type<tc>} {
    %c0 = arith.constant 0 : index
    %c0_0 = arith.constant 0 : index
    %0 = vector.load %arg1[%c0, %c0_0] : memref<32x32xf32, #tpu.memory_space<vmem>>, vector<32x32xf32>
    %c0_1 = arith.constant 0 : index
    %c0_2 = arith.constant 0 : index
    %1 = vector.load %arg2[%c0_1, %c0_2] : memref<32x256xf32, #tpu.memory_space<vmem>>, vector<32x256xf32>
    %cst = arith.constant dense<0.000000e+00> : vector<32x256xf32>
    %2 = tpu.matmul %0, %1, %cst {dimension_numbers = #tpu.dot_dimension_numbers<[1], [0], [0], [1], [0, 0, 1, 1], [], []>} : vector<32x32xf32>, vector<32x256xf32>, vector<32x256xf32> -> vector<32x256xf32>
    %c0_3 = arith.constant 0 : index
    %c0_4 = arith.constant 0 : index
    %3 = vector.load %arg3[%c0_3, %c0_4] : memref<1x256xf32, #tpu.memory_space<vmem>>, vector<1x256xf32>
    %4 = vector.broadcast %3 : vector<1x256xf32> to vector<32x256xf32>
    %5 = arith.addf %2, %4 : vector<32x256xf32>
    %c0_5 = arith.constant 0 : index
    %c0_6 = arith.constant 0 : index
    %6 = vector.load %arg13[%c0_5, %c0_6] : memref<32x256xf32, #tpu.memory_space<vmem>>, vector<32x256xf32>
    tpu.vector_store %arg13[%c0_5, %c0_6], %5 {strides = array<i32>} : memref<32x256xf32, #tpu.memory_space<vmem>>, vector<32x256xf32>,
    %c0_7 = arith.constant 0 : index
    %c0_8 = arith.constant 0 : index
    %7 = vector.load %arg0[%c0_7, %c0_8] : memref<4x1xi32, #tpu.memory_space<vmem>>, vector<4x1xi32>
    %c0_9 = arith.constant 0 : index
    %c0_10 = arith.constant 0 : index
    %8 = vector.load %arg7[%c0_9, %c0_10] : memref<1x128xf32, #tpu.memory_space<vmem>>, vector<1x128xf32>
    %cst_11 = arith.constant 0.000000e+00 : f32
    %9 = vector.broadcast %cst_11 : f32 to vector<4x64xf32>
    %cst_12 = arith.constant 0.000000e+00 : f32
    %10 = vector.broadcast %cst_12 : f32 to vector<4x64xf32>
    %cst_13 = arith.constant 0.000000e+00 : f32
    %11 = vector.broadcast %cst_13 : f32 to vector<4x32xf32>
    %cst_14 = arith.constant 0.000000e+00 : f32
    %12 = vector.broadcast %cst_14 : f32 to vector<4x32xf32>
    %cst_15 = arith.constant 0.000000e+00 : f32
    %13 = vector.broadcast %cst_15 : f32 to vector<4x32xf32>
    %c0_16 = arith.constant 0 : index
    %c0_17 = arith.constant 0 : index
    %14 = vector.load %arg13[%c0_16, %c0_17] : memref<32x256xf32, #tpu.memory_space<vmem>>, vector<4x256xf32>
    %c0_18 = arith.constant 0 : index
    %c0_19 = arith.constant 0 : index
    %15 = vector.load %arg4[%c0_18, %c0_19] : memref<64x256xf32, #tpu.memory_space<vmem>>, vector<64x256xf32>
    %cst_20 = arith.constant dense<0.000000e+00> : vector<4x256xf32>
    %16 = tpu.matmul %9, %15, %cst_20 {dimension_numbers = #tpu.dot_dimension_numbers<[1], [0], [0], [1], [0, 0, 1, 1], [], []>} : vector<4x64xf32>, vector<64x256xf32>, vector<4x256xf32> -> vector<4x256xf32>
    %17 = arith.addf %14, %16 : vector<4x256xf32>
    %18 = vector.extract_strided_slice %17 {offsets = [0, 0], sizes = [4, 64], strides = [1, 1]} : vector<4x256xf32> to vector<4x64xf32>
    %cst_21 = arith.constant 5.000000e-01 : f32
    %19 = vector.broadcast %cst_21 : f32 to vector<4x64xf32>
    %20 = arith.mulf %19, %18 : vector<4x64xf32>
    %21 = math.tanh %20 : vector<4x64xf32>
    %cst_22 = arith.constant 5.000000e-01 : f32
    %22 = vector.broadcast %cst_22 : f32 to vector<4x64xf32>
    %23 = arith.mulf %22, %21 : vector<4x64xf32>
    %cst_23 = arith.constant 5.000000e-01 : f32
    %24 = vector.broadcast %cst_23 : f32 to vector<4x64xf32>
    %25 = arith.addf %23, %24 : vector<4x64xf32>
    %26 = vector.extract_strided_slice %17 {offsets = [0, 64], sizes = [4, 64], strides = [1, 1]} : vector<4x256xf32> to vector<4x64xf32>
    %cst_24 = arith.constant 5.000000e-01 : f32
    %27 = vector.broadcast %cst_24 : f32 to vector<4x64xf32>
    %28 = arith.mulf %27, %26 : vector<4x64xf32>
    %29 = math.tanh %28 : vector<4x64xf32>
    %cst_25 = arith.constant 5.000000e-01 : f32
    %30 = vector.broadcast %cst_25 : f32 to vector<4x64xf32>
    %31 = arith.mulf %30, %29 : vector<4x64xf32>
    %cst_26 = arith.constant 5.000000e-01 : f32
    %32 = vector.broadcast %cst_26 : f32 to vector<4x64xf32>
    %33 = arith.addf %31, %32 : vector<4x64xf32>
    %34 = vector.extract_strided_slice %17 {offsets = [0, 128], sizes = [4, 64], strides = [1, 1]} : vector<4x256xf32> to vector<4x64xf32>
    %35 = math.tanh %34 : vector<4x64xf32>
    %36 = vector.extract_strided_slice %17 {offsets = [0, 192], sizes = [4, 64], strides = [1, 1]} : vector<4x256xf32> to vector<4x64xf32>
    %cst_27 = arith.constant 5.000000e-01 : f32
    %37 = vector.broadcast %cst_27 : f32 to vector<4x64xf32>
    %38 = arith.mulf %37, %36 : vector<4x64xf32>
    %39 = math.tanh %38 : vector<4x64xf32>
    %cst_28 = arith.constant 5.000000e-01 : f32
    %40 = vector.broadcast %cst_28 : f32 to vector<4x64xf32>
    %41 = arith.mulf %40, %39 : vector<4x64xf32>
    %cst_29 = arith.constant 5.000000e-01 : f32
    %42 = vector.broadcast %cst_29 : f32 to vector<4x64xf32>
    %43 = arith.addf %41, %42 : vector<4x64xf32>
    %44 = arith.mulf %33, %10 : vector<4x64xf32>
    %45 = arith.mulf %25, %35 : vector<4x64xf32>
    %46 = arith.addf %44, %45 : vector<4x64xf32>
    %47 = math.tanh %46 : vector<4x64xf32>
    %48 = arith.mulf %43, %47 : vector<4x64xf32>
    %c0_30 = arith.constant 0 : index
    %c0_31 = arith.constant 0 : index
    %49 = vector.load %arg5[%c0_30, %c0_31] : memref<64x128xf32, #tpu.memory_space<vmem>>, vector<64x128xf32>
    %cst_32 = arith.constant dense<0.000000e+00> : vector<4x128xf32>
    %50 = tpu.matmul %48, %49, %cst_32 {dimension_numbers = #tpu.dot_dimension_numbers<[1], [0], [0], [1], [0, 0, 1, 1], [], []>} : vector<4x64xf32>, vector<64x128xf32>, vector<4x128xf32> -> vector<4x128xf32>
    %c0_33 = arith.constant 0 : index
    %c0_34 = arith.constant 0 : index
    %51 = vector.load %arg6[%c0_33, %c0_34] : memref<32x128xf32, #tpu.memory_space<vmem>>, vector<32x128xf32>
    %cst_35 = arith.constant dense<0.000000e+00> : vector<4x128xf32>
    %52 = tpu.matmul %11, %51, %cst_35 {dimension_numbers = #tpu.dot_dimension_numbers<[1], [0], [0], [1], [0, 0, 1, 1], [], []>} : vector<4x32xf32>, vector<32x128xf32>, vector<4x128xf32> -> vector<4x128xf32>
    %53 = arith.addf %50, %52 : vector<4x128xf32>
    %54 = vector.broadcast %8 : vector<1x128xf32> to vector<4x128xf32>
    %55 = arith.addf %53, %54 : vector<4x128xf32>
    %56 = vector.extract_strided_slice %55 {offsets = [0, 0], sizes = [4, 32], strides = [1, 1]} : vector<4x128xf32> to vector<4x32xf32>
    %cst_36 = arith.constant 5.000000e-01 : f32
    %57 = vector.broadcast %cst_36 : f32 to vector<4x32xf32>
    %58 = arith.mulf %57, %56 : vector<4x32xf32>
    %59 = math.tanh %58 : vector<4x32xf32>
    %cst_37 = arith.constant 5.000000e-01 : f32
    %60 = vector.broadcast %cst_37 : f32 to vector<4x32xf32>
    %61 = arith.mulf %60, %59 : vector<4x32xf32>
    %cst_38 = arith.constant 5.000000e-01 : f32
    %62 = vector.broadcast %cst_38 : f32 to vector<4x32xf32>
    %63 = arith.addf %61, %62 : vector<4x32xf32>
    %64 = vector.extract_strided_slice %55 {offsets = [0, 32], sizes = [4, 32], strides = [1, 1]} : vector<4x128xf32> to vector<4x32xf32>
    %cst_39 = arith.constant 5.000000e-01 : f32
    %65 = vector.broadcast %cst_39 : f32 to vector<4x32xf32>
    %66 = arith.mulf %65, %64 : vector<4x32xf32>
    %67 = math.tanh %66 : vector<4x32xf32>
    %cst_40 = arith.constant 5.000000e-01 : f32
    %68 = vector.broadcast %cst_40 : f32 to vector<4x32xf32>
    %69 = arith.mulf %68, %67 : vector<4x32xf32>
    %cst_41 = arith.constant 5.000000e-01 : f32
    %70 = vector.broadcast %cst_41 : f32 to vector<4x32xf32>
    %71 = arith.addf %69, %70 : vector<4x32xf32>
    %72 = vector.extract_strided_slice %55 {offsets = [0, 64], sizes = [4, 32], strides = [1, 1]} : vector<4x128xf32> to vector<4x32xf32>
    %73 = math.tanh %72 : vector<4x32xf32>
    %74 = vector.extract_strided_slice %55 {offsets = [0, 96], sizes = [4, 32], strides = [1, 1]} : vector<4x128xf32> to vector<4x32xf32>
    %cst_42 = arith.constant 5.000000e-01 : f32
    %75 = vector.broadcast %cst_42 : f32 to vector<4x32xf32>
    %76 = arith.mulf %75, %74 : vector<4x32xf32>
    %77 = math.tanh %76 : vector<4x32xf32>
    %cst_43 = arith.constant 5.000000e-01 : f32
    %78 = vector.broadcast %cst_43 : f32 to vector<4x32xf32>
    %79 = arith.mulf %78, %77 : vector<4x32xf32>
    %cst_44 = arith.constant 5.000000e-01 : f32
    %80 = vector.broadcast %cst_44 : f32 to vector<4x32xf32>
    %81 = arith.addf %79, %80 : vector<4x32xf32>
    %82 = arith.mulf %71, %12 : vector<4x32xf32>
    %83 = arith.mulf %63, %73 : vector<4x32xf32>
    %84 = arith.addf %82, %83 : vector<4x32xf32>
    %85 = math.tanh %84 : vector<4x32xf32>
    %86 = arith.mulf %81, %85 : vector<4x32xf32>
    %c0_i32 = arith.constant 0 : i32
    %87 = vector.broadcast %c0_i32 : i32 to vector<4x1xi32>
    %88 = arith.cmpi eq, %7, %87 : vector<4x1xi32>
    %89 = vector.shape_cast %88 : vector<4x1xi1> to vector<4x1xi1>
    %90 = vector.broadcast %89 : vector<4x1xi1> to vector<4x32xi1>
    %91 = arith.select %90, %86, %13 : vector<4x32xi1>, vector<4x32xf32>
    %c4 = arith.constant 4 : index
    %c0_45 = arith.constant 0 : index
    %92 = vector.load %arg13[%c4, %c0_45] : memref<32x256xf32, #tpu.memory_space<vmem>>, vector<4x256xf32>
    %c0_46 = arith.constant 0 : index
    %c0_47 = arith.constant 0 : index
    %93 = vector.load %arg4[%c0_46, %c0_47] : memref<64x256xf32, #tpu.memory_space<vmem>>, vector<64x256xf32>
    %cst_48 = arith.constant dense<0.000000e+00> : vector<4x256xf32>
    %94 = tpu.matmul %48, %93, %cst_48 {dimension_numbers = #tpu.dot_dimension_numbers<[1], [0], [0], [1], [0, 0, 1, 1], [], []>} : vector<4x64xf32>, vector<64x256xf32>, vector<4x256xf32> -> vector<4x256xf32>
    %95 = arith.addf %92, %94 : vector<4x256xf32>
    %96 = vector.extract_strided_slice %95 {offsets = [0, 0], sizes = [4, 64], strides = [1, 1]} : vector<4x256xf32> to vector<4x64xf32>
    %cst_49 = arith.constant 5.000000e-01 : f32
    %97 = vector.broadcast %cst_49 : f32 to vector<4x64xf32>
    %98 = arith.mulf %97, %96 : vector<4x64xf32>
    %99 = math.tanh %98 : vector<4x64xf32>
    %cst_50 = arith.constant 5.000000e-01 : f32
    %100 = vector.broadcast %cst_50 : f32 to vector<4x64xf32>
    %101 = arith.mulf %100, %99 : vector<4x64xf32>
    %cst_51 = arith.constant 5.000000e-01 : f32
    %102 = vector.broadcast %cst_51 : f32 to vector<4x64xf32>
    %103 = arith.addf %101, %102 : vector<4x64xf32>
    %104 = vector.extract_strided_slice %95 {offsets = [0, 64], sizes = [4, 64], strides = [1, 1]} : vector<4x256xf32> to vector<4x64xf32>
    %cst_52 = arith.constant 5.000000e-01 : f32
    %105 = vector.broadcast %cst_52 : f32 to vector<4x64xf32>
    %106 = arith.mulf %105, %104 : vector<4x64xf32>
    %107 = math.tanh %106 : vector<4x64xf32>
    %cst_53 = arith.constant 5.000000e-01 : f32
    %108 = vector.broadcast %cst_53 : f32 to vector<4x64xf32>
    %109 = arith.mulf %108, %107 : vector<4x64xf32>
    %cst_54 = arith.constant 5.000000e-01 : f32
    %110 = vector.broadcast %cst_54 : f32 to vector<4x64xf32>
    %111 = arith.addf %109, %110 : vector<4x64xf32>
    %112 = vector.extract_strided_slice %95 {offsets = [0, 128], sizes = [4, 64], strides = [1, 1]} : vector<4x256xf32> to vector<4x64xf32>
    %113 = math.tanh %112 : vector<4x64xf32>
    %114 = vector.extract_strided_slice %95 {offsets = [0, 192], sizes = [4, 64], strides = [1, 1]} : vector<4x256xf32> to vector<4x64xf32>
    %cst_55 = arith.constant 5.000000e-01 : f32
    %115 = vector.broadcast %cst_55 : f32 to vector<4x64xf32>
    %116 = arith.mulf %115, %114 : vector<4x64xf32>
    %117 = math.tanh %116 : vector<4x64xf32>
    %cst_56 = arith.constant 5.000000e-01 : f32
    %118 = vector.broadcast %cst_56 : f32 to vector<4x64xf32>
    %119 = arith.mulf %118, %117 : vector<4x64xf32>
    %cst_57 = arith.constant 5.000000e-01 : f32
    %120 = vector.broadcast %cst_57 : f32 to vector<4x64xf32>
    %121 = arith.addf %119, %120 : vector<4x64xf32>
    %122 = arith.mulf %111, %46 : vector<4x64xf32>
    %123 = arith.mulf %103, %113 : vector<4x64xf32>
    %124 = arith.addf %122, %123 : vector<4x64xf32>
    %125 = math.tanh %124 : vector<4x64xf32>
    %126 = arith.mulf %121, %125 : vector<4x64xf32>
    %c0_58 = arith.constant 0 : index
    %c0_59 = arith.constant 0 : index
    %127 = vector.load %arg5[%c0_58, %c0_59] : memref<64x128xf32, #tpu.memory_space<vmem>>, vector<64x128xf32>
    %cst_60 = arith.constant dense<0.000000e+00> : vector<4x128xf32>
    %128 = tpu.matmul %126, %127, %cst_60 {dimension_numbers = #tpu.dot_dimension_numbers<[1], [0], [0], [1], [0, 0, 1, 1], [], []>} : vector<4x64xf32>, vector<64x128xf32>, vector<4x128xf32> -> vector<4x128xf32>
    %c0_61 = arith.constant 0 : index
    %c0_62 = arith.constant 0 : index
    %129 = vector.load %arg6[%c0_61, %c0_62] : memref<32x128xf32, #tpu.memory_space<vmem>>, vector<32x128xf32>
    %cst_63 = arith.constant dense<0.000000e+00> : vector<4x128xf32>
    %130 = tpu.matmul %86, %129, %cst_63 {dimension_numbers = #tpu.dot_dimension_numbers<[1], [0], [0], [1], [0, 0, 1, 1], [], []>} : vector<4x32xf32>, vector<32x128xf32>, vector<4x128xf32> -> vector<4x128xf32>
    %131 = arith.addf %128, %130 : vector<4x128xf32>
    %132 = vector.broadcast %8 : vector<1x128xf32> to vector<4x128xf32>
    %133 = arith.addf %131, %132 : vector<4x128xf32>
    %134 = vector.extract_strided_slice %133 {offsets = [0, 0], sizes = [4, 32], strides = [1, 1]} : vector<4x128xf32> to vector<4x32xf32>
    %cst_64 = arith.constant 5.000000e-01 : f32
    %135 = vector.broadcast %cst_64 : f32 to vector<4x32xf32>
    %136 = arith.mulf %135, %134 : vector<4x32xf32>
    %137 = math.tanh %136 : vector<4x32xf32>
    %cst_65 = arith.constant 5.000000e-01 : f32
    %138 = vector.broadcast %cst_65 : f32 to vector<4x32xf32>
    %139 = arith.mulf %138, %137 : vector<4x32xf32>
    %cst_66 = arith.constant 5.000000e-01 : f32
    %140 = vector.broadcast %cst_66 : f32 to vector<4x32xf32>
    %141 = arith.addf %139, %140 : vector<4x32xf32>
    %142 = vector.extract_strided_slice %133 {offsets = [0, 32], sizes = [4, 32], strides = [1, 1]} : vector<4x128xf32> to vector<4x32xf32>
    %cst_67 = arith.constant 5.000000e-01 : f32
    %143 = vector.broadcast %cst_67 : f32 to vector<4x32xf32>
    %144 = arith.mulf %143, %142 : vector<4x32xf32>
    %145 = math.tanh %144 : vector<4x32xf32>
    %cst_68 = arith.constant 5.000000e-01 : f32
    %146 = vector.broadcast %cst_68 : f32 to vector<4x32xf32>
    %147 = arith.mulf %146, %145 : vector<4x32xf32>
    %cst_69 = arith.constant 5.000000e-01 : f32
    %148 = vector.broadcast %cst_69 : f32 to vector<4x32xf32>
    %149 = arith.addf %147, %148 : vector<4x32xf32>
    %150 = vector.extract_strided_slice %133 {offsets = [0, 64], sizes = [4, 32], strides = [1, 1]} : vector<4x128xf32> to vector<4x32xf32>
    %151 = math.tanh %150 : vector<4x32xf32>
    %152 = vector.extract_strided_slice %133 {offsets = [0, 96], sizes = [4, 32], strides = [1, 1]} : vector<4x128xf32> to vector<4x32xf32>
    %cst_70 = arith.constant 5.000000e-01 : f32
    %153 = vector.broadcast %cst_70 : f32 to vector<4x32xf32>
    %154 = arith.mulf %153, %152 : vector<4x32xf32>
    %155 = math.tanh %154 : vector<4x32xf32>
    %cst_71 = arith.constant 5.000000e-01 : f32
    %156 = vector.broadcast %cst_71 : f32 to vector<4x32xf32>
    %157 = arith.mulf %156, %155 : vector<4x32xf32>
    %cst_72 = arith.constant 5.000000e-01 : f32
    %158 = vector.broadcast %cst_72 : f32 to vector<4x32xf32>
    %159 = arith.addf %157, %158 : vector<4x32xf32>
    %160 = arith.mulf %149, %84 : vector<4x32xf32>
    %161 = arith.mulf %141, %151 : vector<4x32xf32>
    %162 = arith.addf %160, %161 : vector<4x32xf32>
    %163 = math.tanh %162 : vector<4x32xf32>
    %164 = arith.mulf %159, %163 : vector<4x32xf32>
    %c1_i32 = arith.constant 1 : i32
    %165 = vector.broadcast %c1_i32 : i32 to vector<4x1xi32>
    %166 = arith.cmpi eq, %7, %165 : vector<4x1xi32>
    %167 = vector.shape_cast %166 : vector<4x1xi1> to vector<4x1xi1>
    %168 = vector.broadcast %167 : vector<4x1xi1> to vector<4x32xi1>
    %169 = arith.select %168, %164, %91 : vector<4x32xi1>, vector<4x32xf32>
    %c8 = arith.constant 8 : index
    %c0_73 = arith.constant 0 : index
    %170 = vector.load %arg13[%c8, %c0_73] : memref<32x256xf32, #tpu.memory_space<vmem>>, vector<4x256xf32>
    %c0_74 = arith.constant 0 : index
    %c0_75 = arith.constant 0 : index
    %171 = vector.load %arg4[%c0_74, %c0_75] : memref<64x256xf32, #tpu.memory_space<vmem>>, vector<64x256xf32>
    %cst_76 = arith.constant dense<0.000000e+00> : vector<4x256xf32>
    %172 = tpu.matmul %126, %171, %cst_76 {dimension_numbers = #tpu.dot_dimension_numbers<[1], [0], [0], [1], [0, 0, 1, 1], [], []>} : vector<4x64xf32>, vector<64x256xf32>, vector<4x256xf32> -> vector<4x256xf32>
    %173 = arith.addf %170, %172 : vector<4x256xf32>
    %174 = vector.extract_strided_slice %173 {offsets = [0, 0], sizes = [4, 64], strides = [1, 1]} : vector<4x256xf32> to vector<4x64xf32>
    %cst_77 = arith.constant 5.000000e-01 : f32
    %175 = vector.broadcast %cst_77 : f32 to vector<4x64xf32>
    %176 = arith.mulf %175, %174 : vector<4x64xf32>
    %177 = math.tanh %176 : vector<4x64xf32>
    %cst_78 = arith.constant 5.000000e-01 : f32
    %178 = vector.broadcast %cst_78 : f32 to vector<4x64xf32>
    %179 = arith.mulf %178, %177 : vector<4x64xf32>
    %cst_79 = arith.constant 5.000000e-01 : f32
    %180 = vector.broadcast %cst_79 : f32 to vector<4x64xf32>
    %181 = arith.addf %179, %180 : vector<4x64xf32>
    %182 = vector.extract_strided_slice %173 {offsets = [0, 64], sizes = [4, 64], strides = [1, 1]} : vector<4x256xf32> to vector<4x64xf32>
    %cst_80 = arith.constant 5.000000e-01 : f32
    %183 = vector.broadcast %cst_80 : f32 to vector<4x64xf32>
    %184 = arith.mulf %183, %182 : vector<4x64xf32>
    %185 = math.tanh %184 : vector<4x64xf32>
    %cst_81 = arith.constant 5.000000e-01 : f32
    %186 = vector.broadcast %cst_81 : f32 to vector<4x64xf32>
    %187 = arith.mulf %186, %185 : vector<4x64xf32>
    %cst_82 = arith.constant 5.000000e-01 : f32
    %188 = vector.broadcast %cst_82 : f32 to vector<4x64xf32>
    %189 = arith.addf %187, %188 : vector<4x64xf32>
    %190 = vector.extract_strided_slice %173 {offsets = [0, 128], sizes = [4, 64], strides = [1, 1]} : vector<4x256xf32> to vector<4x64xf32>
    %191 = math.tanh %190 : vector<4x64xf32>
    %192 = vector.extract_strided_slice %173 {offsets = [0, 192], sizes = [4, 64], strides = [1, 1]} : vector<4x256xf32> to vector<4x64xf32>
    %cst_83 = arith.constant 5.000000e-01 : f32
    %193 = vector.broadcast %cst_83 : f32 to vector<4x64xf32>
    %194 = arith.mulf %193, %192 : vector<4x64xf32>
    %195 = math.tanh %194 : vector<4x64xf32>
    %cst_84 = arith.constant 5.000000e-01 : f32
    %196 = vector.broadcast %cst_84 : f32 to vector<4x64xf32>
    %197 = arith.mulf %196, %195 : vector<4x64xf32>
    %cst_85 = arith.constant 5.000000e-01 : f32
    %198 = vector.broadcast %cst_85 : f32 to vector<4x64xf32>
    %199 = arith.addf %197, %198 : vector<4x64xf32>
    %200 = arith.mulf %189, %124 : vector<4x64xf32>
    %201 = arith.mulf %181, %191 : vector<4x64xf32>
    %202 = arith.addf %200, %201 : vector<4x64xf32>
    %203 = math.tanh %202 : vector<4x64xf32>
    %204 = arith.mulf %199, %203 : vector<4x64xf32>
    %c0_86 = arith.constant 0 : index
    %c0_87 = arith.constant 0 : index
    %205 = vector.load %arg5[%c0_86, %c0_87] : memref<64x128xf32, #tpu.memory_space<vmem>>, vector<64x128xf32>
    %cst_88 = arith.constant dense<0.000000e+00> : vector<4x128xf32>
    %206 = tpu.matmul %204, %205, %cst_88 {dimension_numbers = #tpu.dot_dimension_numbers<[1], [0], [0], [1], [0, 0, 1, 1], [], []>} : vector<4x64xf32>, vector<64x128xf32>, vector<4x128xf32> -> vector<4x128xf32>
    %c0_89 = arith.constant 0 : index
    %c0_90 = arith.constant 0 : index
    %207 = vector.load %arg6[%c0_89, %c0_90] : memref<32x128xf32, #tpu.memory_space<vmem>>, vector<32x128xf32>
    %cst_91 = arith.constant dense<0.000000e+00> : vector<4x128xf32>
    %208 = tpu.matmul %164, %207, %cst_91 {dimension_numbers = #tpu.dot_dimension_numbers<[1], [0], [0], [1], [0, 0, 1, 1], [], []>} : vector<4x32xf32>, vector<32x128xf32>, vector<4x128xf32> -> vector<4x128xf32>
    %209 = arith.addf %206, %208 : vector<4x128xf32>
    %210 = vector.broadcast %8 : vector<1x128xf32> to vector<4x128xf32>
    %211 = arith.addf %209, %210 : vector<4x128xf32>
    %212 = vector.extract_strided_slice %211 {offsets = [0, 0], sizes = [4, 32], strides = [1, 1]} : vector<4x128xf32> to vector<4x32xf32>
    %cst_92 = arith.constant 5.000000e-01 : f32
    %213 = vector.broadcast %cst_92 : f32 to vector<4x32xf32>
    %214 = arith.mulf %213, %212 : vector<4x32xf32>
    %215 = math.tanh %214 : vector<4x32xf32>
    %cst_93 = arith.constant 5.000000e-01 : f32
    %216 = vector.broadcast %cst_93 : f32 to vector<4x32xf32>
    %217 = arith.mulf %216, %215 : vector<4x32xf32>
    %cst_94 = arith.constant 5.000000e-01 : f32
    %218 = vector.broadcast %cst_94 : f32 to vector<4x32xf32>
    %219 = arith.addf %217, %218 : vector<4x32xf32>
    %220 = vector.extract_strided_slice %211 {offsets = [0, 32], sizes = [4, 32], strides = [1, 1]} : vector<4x128xf32> to vector<4x32xf32>
    %cst_95 = arith.constant 5.000000e-01 : f32
    %221 = vector.broadcast %cst_95 : f32 to vector<4x32xf32>
    %222 = arith.mulf %221, %220 : vector<4x32xf32>
    %223 = math.tanh %222 : vector<4x32xf32>
    %cst_96 = arith.constant 5.000000e-01 : f32
    %224 = vector.broadcast %cst_96 : f32 to vector<4x32xf32>
    %225 = arith.mulf %224, %223 : vector<4x32xf32>
    %cst_97 = arith.constant 5.000000e-01 : f32
    %226 = vector.broadcast %cst_97 : f32 to vector<4x32xf32>
    %227 = arith.addf %225, %226 : vector<4x32xf32>
    %228 = vector.extract_strided_slice %211 {offsets = [0, 64], sizes = [4, 32], strides = [1, 1]} : vector<4x128xf32> to vector<4x32xf32>
    %229 = math.tanh %228 : vector<4x32xf32>
    %230 = vector.extract_strided_slice %211 {offsets = [0, 96], sizes = [4, 32], strides = [1, 1]} : vector<4x128xf32> to vector<4x32xf32>
    %cst_98 = arith.constant 5.000000e-01 : f32
    %231 = vector.broadcast %cst_98 : f32 to vector<4x32xf32>
    %232 = arith.mulf %231, %230 : vector<4x32xf32>
    %233 = math.tanh %232 : vector<4x32xf32>
    %cst_99 = arith.constant 5.000000e-01 : f32
    %234 = vector.broadcast %cst_99 : f32 to vector<4x32xf32>
    %235 = arith.mulf %234, %233 : vector<4x32xf32>
    %cst_100 = arith.constant 5.000000e-01 : f32
    %236 = vector.broadcast %cst_100 : f32 to vector<4x32xf32>
    %237 = arith.addf %235, %236 : vector<4x32xf32>
    %238 = arith.mulf %227, %162 : vector<4x32xf32>
    %239 = arith.mulf %219, %229 : vector<4x32xf32>
    %240 = arith.addf %238, %239 : vector<4x32xf32>
    %241 = math.tanh %240 : vector<4x32xf32>
    %242 = arith.mulf %237, %241 : vector<4x32xf32>
    %c2_i32 = arith.constant 2 : i32
    %243 = vector.broadcast %c2_i32 : i32 to vector<4x1xi32>
    %244 = arith.cmpi eq, %7, %243 : vector<4x1xi32>
    %245 = vector.shape_cast %244 : vector<4x1xi1> to vector<4x1xi1>
    %246 = vector.broadcast %245 : vector<4x1xi1> to vector<4x32xi1>
    %247 = arith.select %246, %242, %169 : vector<4x32xi1>, vector<4x32xf32>
    %c12 = arith.constant 12 : index
    %c0_101 = arith.constant 0 : index
    %248 = vector.load %arg13[%c12, %c0_101] : memref<32x256xf32, #tpu.memory_space<vmem>>, vector<4x256xf32>
    %c0_102 = arith.constant 0 : index
    %c0_103 = arith.constant 0 : index
    %249 = vector.load %arg4[%c0_102, %c0_103] : memref<64x256xf32, #tpu.memory_space<vmem>>, vector<64x256xf32>
    %cst_104 = arith.constant dense<0.000000e+00> : vector<4x256xf32>
    %250 = tpu.matmul %204, %249, %cst_104 {dimension_numbers = #tpu.dot_dimension_numbers<[1], [0], [0], [1], [0, 0, 1, 1], [], []>} : vector<4x64xf32>, vector<64x256xf32>, vector<4x256xf32> -> vector<4x256xf32>
    %251 = arith.addf %248, %250 : vector<4x256xf32>
    %252 = vector.extract_strided_slice %251 {offsets = [0, 0], sizes = [4, 64], strides = [1, 1]} : vector<4x256xf32> to vector<4x64xf32>
    %cst_105 = arith.constant 5.000000e-01 : f32
    %253 = vector.broadcast %cst_105 : f32 to vector<4x64xf32>
    %254 = arith.mulf %253, %252 : vector<4x64xf32>
    %255 = math.tanh %254 : vector<4x64xf32>
    %cst_106 = arith.constant 5.000000e-01 : f32
    %256 = vector.broadcast %cst_106 : f32 to vector<4x64xf32>
    %257 = arith.mulf %256, %255 : vector<4x64xf32>
    %cst_107 = arith.constant 5.000000e-01 : f32
    %258 = vector.broadcast %cst_107 : f32 to vector<4x64xf32>
    %259 = arith.addf %257, %258 : vector<4x64xf32>
    %260 = vector.extract_strided_slice %251 {offsets = [0, 64], sizes = [4, 64], strides = [1, 1]} : vector<4x256xf32> to vector<4x64xf32>
    %cst_108 = arith.constant 5.000000e-01 : f32
    %261 = vector.broadcast %cst_108 : f32 to vector<4x64xf32>
    %262 = arith.mulf %261, %260 : vector<4x64xf32>
    %263 = math.tanh %262 : vector<4x64xf32>
    %cst_109 = arith.constant 5.000000e-01 : f32
    %264 = vector.broadcast %cst_109 : f32 to vector<4x64xf32>
    %265 = arith.mulf %264, %263 : vector<4x64xf32>
    %cst_110 = arith.constant 5.000000e-01 : f32
    %266 = vector.broadcast %cst_110 : f32 to vector<4x64xf32>
    %267 = arith.addf %265, %266 : vector<4x64xf32>
    %268 = vector.extract_strided_slice %251 {offsets = [0, 128], sizes = [4, 64], strides = [1, 1]} : vector<4x256xf32> to vector<4x64xf32>
    %269 = math.tanh %268 : vector<4x64xf32>
    %270 = vector.extract_strided_slice %251 {offsets = [0, 192], sizes = [4, 64], strides = [1, 1]} : vector<4x256xf32> to vector<4x64xf32>
    %cst_111 = arith.constant 5.000000e-01 : f32
    %271 = vector.broadcast %cst_111 : f32 to vector<4x64xf32>
    %272 = arith.mulf %271, %270 : vector<4x64xf32>
    %273 = math.tanh %272 : vector<4x64xf32>
    %cst_112 = arith.constant 5.000000e-01 : f32
    %274 = vector.broadcast %cst_112 : f32 to vector<4x64xf32>
    %275 = arith.mulf %274, %273 : vector<4x64xf32>
    %cst_113 = arith.constant 5.000000e-01 : f32
    %276 = vector.broadcast %cst_113 : f32 to vector<4x64xf32>
    %277 = arith.addf %275, %276 : vector<4x64xf32>
    %278 = arith.mulf %267, %202 : vector<4x64xf32>
    %279 = arith.mulf %259, %269 : vector<4x64xf32>
    %280 = arith.addf %278, %279 : vector<4x64xf32>
    %281 = math.tanh %280 : vector<4x64xf32>
    %282 = arith.mulf %277, %281 : vector<4x64xf32>
    %c0_114 = arith.constant 0 : index
    %c0_115 = arith.constant 0 : index
    %283 = vector.load %arg5[%c0_114, %c0_115] : memref<64x128xf32, #tpu.memory_space<vmem>>, vector<64x128xf32>
    %cst_116 = arith.constant dense<0.000000e+00> : vector<4x128xf32>
    %284 = tpu.matmul %282, %283, %cst_116 {dimension_numbers = #tpu.dot_dimension_numbers<[1], [0], [0], [1], [0, 0, 1, 1], [], []>} : vector<4x64xf32>, vector<64x128xf32>, vector<4x128xf32> -> vector<4x128xf32>
    %c0_117 = arith.constant 0 : index
    %c0_118 = arith.constant 0 : index
    %285 = vector.load %arg6[%c0_117, %c0_118] : memref<32x128xf32, #tpu.memory_space<vmem>>, vector<32x128xf32>
    %cst_119 = arith.constant dense<0.000000e+00> : vector<4x128xf32>
    %286 = tpu.matmul %242, %285, %cst_119 {dimension_numbers = #tpu.dot_dimension_numbers<[1], [0], [0], [1], [0, 0, 1, 1], [], []>} : vector<4x32xf32>, vector<32x128xf32>, vector<4x128xf32> -> vector<4x128xf32>
    %287 = arith.addf %284, %286 : vector<4x128xf32>
    %288 = vector.broadcast %8 : vector<1x128xf32> to vector<4x128xf32>
    %289 = arith.addf %287, %288 : vector<4x128xf32>
    %290 = vector.extract_strided_slice %289 {offsets = [0, 0], sizes = [4, 32], strides = [1, 1]} : vector<4x128xf32> to vector<4x32xf32>
    %cst_120 = arith.constant 5.000000e-01 : f32
    %291 = vector.broadcast %cst_120 : f32 to vector<4x32xf32>
    %292 = arith.mulf %291, %290 : vector<4x32xf32>
    %293 = math.tanh %292 : vector<4x32xf32>
    %cst_121 = arith.constant 5.000000e-01 : f32
    %294 = vector.broadcast %cst_121 : f32 to vector<4x32xf32>
    %295 = arith.mulf %294, %293 : vector<4x32xf32>
    %cst_122 = arith.constant 5.000000e-01 : f32
    %296 = vector.broadcast %cst_122 : f32 to vector<4x32xf32>
    %297 = arith.addf %295, %296 : vector<4x32xf32>
    %298 = vector.extract_strided_slice %289 {offsets = [0, 32], sizes = [4, 32], strides = [1, 1]} : vector<4x128xf32> to vector<4x32xf32>
    %cst_123 = arith.constant 5.000000e-01 : f32
    %299 = vector.broadcast %cst_123 : f32 to vector<4x32xf32>
    %300 = arith.mulf %299, %298 : vector<4x32xf32>
    %301 = math.tanh %300 : vector<4x32xf32>
    %cst_124 = arith.constant 5.000000e-01 : f32
    %302 = vector.broadcast %cst_124 : f32 to vector<4x32xf32>
    %303 = arith.mulf %302, %301 : vector<4x32xf32>
    %cst_125 = arith.constant 5.000000e-01 : f32
    %304 = vector.broadcast %cst_125 : f32 to vector<4x32xf32>
    %305 = arith.addf %303, %304 : vector<4x32xf32>
    %306 = vector.extract_strided_slice %289 {offsets = [0, 64], sizes = [4, 32], strides = [1, 1]} : vector<4x128xf32> to vector<4x32xf32>
    %307 = math.tanh %306 : vector<4x32xf32>
    %308 = vector.extract_strided_slice %289 {offsets = [0, 96], sizes = [4, 32], strides = [1, 1]} : vector<4x128xf32> to vector<4x32xf32>
    %cst_126 = arith.constant 5.000000e-01 : f32
    %309 = vector.broadcast %cst_126 : f32 to vector<4x32xf32>
    %310 = arith.mulf %309, %308 : vector<4x32xf32>
    %311 = math.tanh %310 : vector<4x32xf32>
    %cst_127 = arith.constant 5.000000e-01 : f32
    %312 = vector.broadcast %cst_127 : f32 to vector<4x32xf32>
    %313 = arith.mulf %312, %311 : vector<4x32xf32>
    %cst_128 = arith.constant 5.000000e-01 : f32
    %314 = vector.broadcast %cst_128 : f32 to vector<4x32xf32>
    %315 = arith.addf %313, %314 : vector<4x32xf32>
    %316 = arith.mulf %305, %240 : vector<4x32xf32>
    %317 = arith.mulf %297, %307 : vector<4x32xf32>
    %318 = arith.addf %316, %317 : vector<4x32xf32>
    %319 = math.tanh %318 : vector<4x32xf32>
    %320 = arith.mulf %315, %319 : vector<4x32xf32>
    %c3_i32 = arith.constant 3 : i32
    %321 = vector.broadcast %c3_i32 : i32 to vector<4x1xi32>
    %322 = arith.cmpi eq, %7, %321 : vector<4x1xi32>
    %323 = vector.shape_cast %322 : vector<4x1xi1> to vector<4x1xi1>
    %324 = vector.broadcast %323 : vector<4x1xi1> to vector<4x32xi1>
    %325 = arith.select %324, %320, %247 : vector<4x32xi1>, vector<4x32xf32>
    %c16 = arith.constant 16 : index
    %c0_129 = arith.constant 0 : index
    %326 = vector.load %arg13[%c16, %c0_129] : memref<32x256xf32, #tpu.memory_space<vmem>>, vector<4x256xf32>
    %c0_130 = arith.constant 0 : index
    %c0_131 = arith.constant 0 : index
    %327 = vector.load %arg4[%c0_130, %c0_131] : memref<64x256xf32, #tpu.memory_space<vmem>>, vector<64x256xf32>
    %cst_132 = arith.constant dense<0.000000e+00> : vector<4x256xf32>
    %328 = tpu.matmul %282, %327, %cst_132 {dimension_numbers = #tpu.dot_dimension_numbers<[1], [0], [0], [1], [0, 0, 1, 1], [], []>} : vector<4x64xf32>, vector<64x256xf32>, vector<4x256xf32> -> vector<4x256xf32>
    %329 = arith.addf %326, %328 : vector<4x256xf32>
    %330 = vector.extract_strided_slice %329 {offsets = [0, 0], sizes = [4, 64], strides = [1, 1]} : vector<4x256xf32> to vector<4x64xf32>
    %cst_133 = arith.constant 5.000000e-01 : f32
    %331 = vector.broadcast %cst_133 : f32 to vector<4x64xf32>
    %332 = arith.mulf %331, %330 : vector<4x64xf32>
    %333 = math.tanh %332 : vector<4x64xf32>
    %cst_134 = arith.constant 5.000000e-01 : f32
    %334 = vector.broadcast %cst_134 : f32 to vector<4x64xf32>
    %335 = arith.mulf %334, %333 : vector<4x64xf32>
    %cst_135 = arith.constant 5.000000e-01 : f32
    %336 = vector.broadcast %cst_135 : f32 to vector<4x64xf32>
    %337 = arith.addf %335, %336 : vector<4x64xf32>
    %338 = vector.extract_strided_slice %329 {offsets = [0, 64], sizes = [4, 64], strides = [1, 1]} : vector<4x256xf32> to vector<4x64xf32>
    %cst_136 = arith.constant 5.000000e-01 : f32
    %339 = vector.broadcast %cst_136 : f32 to vector<4x64xf32>
    %340 = arith.mulf %339, %338 : vector<4x64xf32>
    %341 = math.tanh %340 : vector<4x64xf32>
    %cst_137 = arith.constant 5.000000e-01 : f32
    %342 = vector.broadcast %cst_137 : f32 to vector<4x64xf32>
    %343 = arith.mulf %342, %341 : vector<4x64xf32>
    %cst_138 = arith.constant 5.000000e-01 : f32
    %344 = vector.broadcast %cst_138 : f32 to vector<4x64xf32>
    %345 = arith.addf %343, %344 : vector<4x64xf32>
    %346 = vector.extract_strided_slice %329 {offsets = [0, 128], sizes = [4, 64], strides = [1, 1]} : vector<4x256xf32> to vector<4x64xf32>
    %347 = math.tanh %346 : vector<4x64xf32>
    %348 = vector.extract_strided_slice %329 {offsets = [0, 192], sizes = [4, 64], strides = [1, 1]} : vector<4x256xf32> to vector<4x64xf32>
    %cst_139 = arith.constant 5.000000e-01 : f32
    %349 = vector.broadcast %cst_139 : f32 to vector<4x64xf32>
    %350 = arith.mulf %349, %348 : vector<4x64xf32>
    %351 = math.tanh %350 : vector<4x64xf32>
    %cst_140 = arith.constant 5.000000e-01 : f32
    %352 = vector.broadcast %cst_140 : f32 to vector<4x64xf32>
    %353 = arith.mulf %352, %351 : vector<4x64xf32>
    %cst_141 = arith.constant 5.000000e-01 : f32
    %354 = vector.broadcast %cst_141 : f32 to vector<4x64xf32>
    %355 = arith.addf %353, %354 : vector<4x64xf32>
    %356 = arith.mulf %345, %280 : vector<4x64xf32>
    %357 = arith.mulf %337, %347 : vector<4x64xf32>
    %358 = arith.addf %356, %357 : vector<4x64xf32>
    %359 = math.tanh %358 : vector<4x64xf32>
    %360 = arith.mulf %355, %359 : vector<4x64xf32>
    %c0_142 = arith.constant 0 : index
    %c0_143 = arith.constant 0 : index
    %361 = vector.load %arg5[%c0_142, %c0_143] : memref<64x128xf32, #tpu.memory_space<vmem>>, vector<64x128xf32>
    %cst_144 = arith.constant dense<0.000000e+00> : vector<4x128xf32>
    %362 = tpu.matmul %360, %361, %cst_144 {dimension_numbers = #tpu.dot_dimension_numbers<[1], [0], [0], [1], [0, 0, 1, 1], [], []>} : vector<4x64xf32>, vector<64x128xf32>, vector<4x128xf32> -> vector<4x128xf32>
    %c0_145 = arith.constant 0 : index
    %c0_146 = arith.constant 0 : index
    %363 = vector.load %arg6[%c0_145, %c0_146] : memref<32x128xf32, #tpu.memory_space<vmem>>, vector<32x128xf32>
    %cst_147 = arith.constant dense<0.000000e+00> : vector<4x128xf32>
    %364 = tpu.matmul %320, %363, %cst_147 {dimension_numbers = #tpu.dot_dimension_numbers<[1], [0], [0], [1], [0, 0, 1, 1], [], []>} : vector<4x32xf32>, vector<32x128xf32>, vector<4x128xf32> -> vector<4x128xf32>
    %365 = arith.addf %362, %364 : vector<4x128xf32>
    %366 = vector.broadcast %8 : vector<1x128xf32> to vector<4x128xf32>
    %367 = arith.addf %365, %366 : vector<4x128xf32>
    %368 = vector.extract_strided_slice %367 {offsets = [0, 0], sizes = [4, 32], strides = [1, 1]} : vector<4x128xf32> to vector<4x32xf32>
    %cst_148 = arith.constant 5.000000e-01 : f32
    %369 = vector.broadcast %cst_148 : f32 to vector<4x32xf32>
    %370 = arith.mulf %369, %368 : vector<4x32xf32>
    %371 = math.tanh %370 : vector<4x32xf32>
    %cst_149 = arith.constant 5.000000e-01 : f32
    %372 = vector.broadcast %cst_149 : f32 to vector<4x32xf32>
    %373 = arith.mulf %372, %371 : vector<4x32xf32>
    %cst_150 = arith.constant 5.000000e-01 : f32
    %374 = vector.broadcast %cst_150 : f32 to vector<4x32xf32>
    %375 = arith.addf %373, %374 : vector<4x32xf32>
    %376 = vector.extract_strided_slice %367 {offsets = [0, 32], sizes = [4, 32], strides = [1, 1]} : vector<4x128xf32> to vector<4x32xf32>
    %cst_151 = arith.constant 5.000000e-01 : f32
    %377 = vector.broadcast %cst_151 : f32 to vector<4x32xf32>
    %378 = arith.mulf %377, %376 : vector<4x32xf32>
    %379 = math.tanh %378 : vector<4x32xf32>
    %cst_152 = arith.constant 5.000000e-01 : f32
    %380 = vector.broadcast %cst_152 : f32 to vector<4x32xf32>
    %381 = arith.mulf %380, %379 : vector<4x32xf32>
    %cst_153 = arith.constant 5.000000e-01 : f32
    %382 = vector.broadcast %cst_153 : f32 to vector<4x32xf32>
    %383 = arith.addf %381, %382 : vector<4x32xf32>
    %384 = vector.extract_strided_slice %367 {offsets = [0, 64], sizes = [4, 32], strides = [1, 1]} : vector<4x128xf32> to vector<4x32xf32>
    %385 = math.tanh %384 : vector<4x32xf32>
    %386 = vector.extract_strided_slice %367 {offsets = [0, 96], sizes = [4, 32], strides = [1, 1]} : vector<4x128xf32> to vector<4x32xf32>
    %cst_154 = arith.constant 5.000000e-01 : f32
    %387 = vector.broadcast %cst_154 : f32 to vector<4x32xf32>
    %388 = arith.mulf %387, %386 : vector<4x32xf32>
    %389 = math.tanh %388 : vector<4x32xf32>
    %cst_155 = arith.constant 5.000000e-01 : f32
    %390 = vector.broadcast %cst_155 : f32 to vector<4x32xf32>
    %391 = arith.mulf %390, %389 : vector<4x32xf32>
    %cst_156 = arith.constant 5.000000e-01 : f32
    %392 = vector.broadcast %cst_156 : f32 to vector<4x32xf32>
    %393 = arith.addf %391, %392 : vector<4x32xf32>
    %394 = arith.mulf %383, %318 : vector<4x32xf32>
    %395 = arith.mulf %375, %385 : vector<4x32xf32>
    %396 = arith.addf %394, %395 : vector<4x32xf32>
    %397 = math.tanh %396 : vector<4x32xf32>
    %398 = arith.mulf %393, %397 : vector<4x32xf32>
    %c4_i32 = arith.constant 4 : i32
    %399 = vector.broadcast %c4_i32 : i32 to vector<4x1xi32>
    %400 = arith.cmpi eq, %7, %399 : vector<4x1xi32>
    %401 = vector.shape_cast %400 : vector<4x1xi1> to vector<4x1xi1>
    %402 = vector.broadcast %401 : vector<4x1xi1> to vector<4x32xi1>
    %403 = arith.select %402, %398, %325 : vector<4x32xi1>, vector<4x32xf32>
    %c20 = arith.constant 20 : index
    %c0_157 = arith.constant 0 : index
    %404 = vector.load %arg13[%c20, %c0_157] : memref<32x256xf32, #tpu.memory_space<vmem>>, vector<4x256xf32>
    %c0_158 = arith.constant 0 : index
    %c0_159 = arith.constant 0 : index
    %405 = vector.load %arg4[%c0_158, %c0_159] : memref<64x256xf32, #tpu.memory_space<vmem>>, vector<64x256xf32>
    %cst_160 = arith.constant dense<0.000000e+00> : vector<4x256xf32>
    %406 = tpu.matmul %360, %405, %cst_160 {dimension_numbers = #tpu.dot_dimension_numbers<[1], [0], [0], [1], [0, 0, 1, 1], [], []>} : vector<4x64xf32>, vector<64x256xf32>, vector<4x256xf32> -> vector<4x256xf32>
    %407 = arith.addf %404, %406 : vector<4x256xf32>
    %408 = vector.extract_strided_slice %407 {offsets = [0, 0], sizes = [4, 64], strides = [1, 1]} : vector<4x256xf32> to vector<4x64xf32>
    %cst_161 = arith.constant 5.000000e-01 : f32
    %409 = vector.broadcast %cst_161 : f32 to vector<4x64xf32>
    %410 = arith.mulf %409, %408 : vector<4x64xf32>
    %411 = math.tanh %410 : vector<4x64xf32>
    %cst_162 = arith.constant 5.000000e-01 : f32
    %412 = vector.broadcast %cst_162 : f32 to vector<4x64xf32>
    %413 = arith.mulf %412, %411 : vector<4x64xf32>
    %cst_163 = arith.constant 5.000000e-01 : f32
    %414 = vector.broadcast %cst_163 : f32 to vector<4x64xf32>
    %415 = arith.addf %413, %414 : vector<4x64xf32>
    %416 = vector.extract_strided_slice %407 {offsets = [0, 64], sizes = [4, 64], strides = [1, 1]} : vector<4x256xf32> to vector<4x64xf32>
    %cst_164 = arith.constant 5.000000e-01 : f32
    %417 = vector.broadcast %cst_164 : f32 to vector<4x64xf32>
    %418 = arith.mulf %417, %416 : vector<4x64xf32>
    %419 = math.tanh %418 : vector<4x64xf32>
    %cst_165 = arith.constant 5.000000e-01 : f32
    %420 = vector.broadcast %cst_165 : f32 to vector<4x64xf32>
    %421 = arith.mulf %420, %419 : vector<4x64xf32>
    %cst_166 = arith.constant 5.000000e-01 : f32
    %422 = vector.broadcast %cst_166 : f32 to vector<4x64xf32>
    %423 = arith.addf %421, %422 : vector<4x64xf32>
    %424 = vector.extract_strided_slice %407 {offsets = [0, 128], sizes = [4, 64], strides = [1, 1]} : vector<4x256xf32> to vector<4x64xf32>
    %425 = math.tanh %424 : vector<4x64xf32>
    %426 = vector.extract_strided_slice %407 {offsets = [0, 192], sizes = [4, 64], strides = [1, 1]} : vector<4x256xf32> to vector<4x64xf32>
    %cst_167 = arith.constant 5.000000e-01 : f32
    %427 = vector.broadcast %cst_167 : f32 to vector<4x64xf32>
    %428 = arith.mulf %427, %426 : vector<4x64xf32>
    %429 = math.tanh %428 : vector<4x64xf32>
    %cst_168 = arith.constant 5.000000e-01 : f32
    %430 = vector.broadcast %cst_168 : f32 to vector<4x64xf32>
    %431 = arith.mulf %430, %429 : vector<4x64xf32>
    %cst_169 = arith.constant 5.000000e-01 : f32
    %432 = vector.broadcast %cst_169 : f32 to vector<4x64xf32>
    %433 = arith.addf %431, %432 : vector<4x64xf32>
    %434 = arith.mulf %423, %358 : vector<4x64xf32>
    %435 = arith.mulf %415, %425 : vector<4x64xf32>
    %436 = arith.addf %434, %435 : vector<4x64xf32>
    %437 = math.tanh %436 : vector<4x64xf32>
    %438 = arith.mulf %433, %437 : vector<4x64xf32>
    %c0_170 = arith.constant 0 : index
    %c0_171 = arith.constant 0 : index
    %439 = vector.load %arg5[%c0_170, %c0_171] : memref<64x128xf32, #tpu.memory_space<vmem>>, vector<64x128xf32>
    %cst_172 = arith.constant dense<0.000000e+00> : vector<4x128xf32>
    %440 = tpu.matmul %438, %439, %cst_172 {dimension_numbers = #tpu.dot_dimension_numbers<[1], [0], [0], [1], [0, 0, 1, 1], [], []>} : vector<4x64xf32>, vector<64x128xf32>, vector<4x128xf32> -> vector<4x128xf32>
    %c0_173 = arith.constant 0 : index
    %c0_174 = arith.constant 0 : index
    %441 = vector.load %arg6[%c0_173, %c0_174] : memref<32x128xf32, #tpu.memory_space<vmem>>, vector<32x128xf32>
    %cst_175 = arith.constant dense<0.000000e+00> : vector<4x128xf32>
    %442 = tpu.matmul %398, %441, %cst_175 {dimension_numbers = #tpu.dot_dimension_numbers<[1], [0], [0], [1], [0, 0, 1, 1], [], []>} : vector<4x32xf32>, vector<32x128xf32>, vector<4x128xf32> -> vector<4x128xf32>
    %443 = arith.addf %440, %442 : vector<4x128xf32>
    %444 = vector.broadcast %8 : vector<1x128xf32> to vector<4x128xf32>
    %445 = arith.addf %443, %444 : vector<4x128xf32>
    %446 = vector.extract_strided_slice %445 {offsets = [0, 0], sizes = [4, 32], strides = [1, 1]} : vector<4x128xf32> to vector<4x32xf32>
    %cst_176 = arith.constant 5.000000e-01 : f32
    %447 = vector.broadcast %cst_176 : f32 to vector<4x32xf32>
    %448 = arith.mulf %447, %446 : vector<4x32xf32>
    %449 = math.tanh %448 : vector<4x32xf32>
    %cst_177 = arith.constant 5.000000e-01 : f32
    %450 = vector.broadcast %cst_177 : f32 to vector<4x32xf32>
    %451 = arith.mulf %450, %449 : vector<4x32xf32>
    %cst_178 = arith.constant 5.000000e-01 : f32
    %452 = vector.broadcast %cst_178 : f32 to vector<4x32xf32>
    %453 = arith.addf %451, %452 : vector<4x32xf32>
    %454 = vector.extract_strided_slice %445 {offsets = [0, 32], sizes = [4, 32], strides = [1, 1]} : vector<4x128xf32> to vector<4x32xf32>
    %cst_179 = arith.constant 5.000000e-01 : f32
    %455 = vector.broadcast %cst_179 : f32 to vector<4x32xf32>
    %456 = arith.mulf %455, %454 : vector<4x32xf32>
    %457 = math.tanh %456 : vector<4x32xf32>
    %cst_180 = arith.constant 5.000000e-01 : f32
    %458 = vector.broadcast %cst_180 : f32 to vector<4x32xf32>
    %459 = arith.mulf %458, %457 : vector<4x32xf32>
    %cst_181 = arith.constant 5.000000e-01 : f32
    %460 = vector.broadcast %cst_181 : f32 to vector<4x32xf32>
    %461 = arith.addf %459, %460 : vector<4x32xf32>
    %462 = vector.extract_strided_slice %445 {offsets = [0, 64], sizes = [4, 32], strides = [1, 1]} : vector<4x128xf32> to vector<4x32xf32>
    %463 = math.tanh %462 : vector<4x32xf32>
    %464 = vector.extract_strided_slice %445 {offsets = [0, 96], sizes = [4, 32], strides = [1, 1]} : vector<4x128xf32> to vector<4x32xf32>
    %cst_182 = arith.constant 5.000000e-01 : f32
    %465 = vector.broadcast %cst_182 : f32 to vector<4x32xf32>
    %466 = arith.mulf %465, %464 : vector<4x32xf32>
    %467 = math.tanh %466 : vector<4x32xf32>
    %cst_183 = arith.constant 5.000000e-01 : f32
    %468 = vector.broadcast %cst_183 : f32 to vector<4x32xf32>
    %469 = arith.mulf %468, %467 : vector<4x32xf32>
    %cst_184 = arith.constant 5.000000e-01 : f32
    %470 = vector.broadcast %cst_184 : f32 to vector<4x32xf32>
    %471 = arith.addf %469, %470 : vector<4x32xf32>
    %472 = arith.mulf %461, %396 : vector<4x32xf32>
    %473 = arith.mulf %453, %463 : vector<4x32xf32>
    %474 = arith.addf %472, %473 : vector<4x32xf32>
    %475 = math.tanh %474 : vector<4x32xf32>
    %476 = arith.mulf %471, %475 : vector<4x32xf32>
    %c5_i32 = arith.constant 5 : i32
    %477 = vector.broadcast %c5_i32 : i32 to vector<4x1xi32>
    %478 = arith.cmpi eq, %7, %477 : vector<4x1xi32>
    %479 = vector.shape_cast %478 : vector<4x1xi1> to vector<4x1xi1>
    %480 = vector.broadcast %479 : vector<4x1xi1> to vector<4x32xi1>
    %481 = arith.select %480, %476, %403 : vector<4x32xi1>, vector<4x32xf32>
    %c24 = arith.constant 24 : index
    %c0_185 = arith.constant 0 : index
    %482 = vector.load %arg13[%c24, %c0_185] : memref<32x256xf32, #tpu.memory_space<vmem>>, vector<4x256xf32>
    %c0_186 = arith.constant 0 : index
    %c0_187 = arith.constant 0 : index
    %483 = vector.load %arg4[%c0_186, %c0_187] : memref<64x256xf32, #tpu.memory_space<vmem>>, vector<64x256xf32>
    %cst_188 = arith.constant dense<0.000000e+00> : vector<4x256xf32>
    %484 = tpu.matmul %438, %483, %cst_188 {dimension_numbers = #tpu.dot_dimension_numbers<[1], [0], [0], [1], [0, 0, 1, 1], [], []>} : vector<4x64xf32>, vector<64x256xf32>, vector<4x256xf32> -> vector<4x256xf32>
    %485 = arith.addf %482, %484 : vector<4x256xf32>
    %486 = vector.extract_strided_slice %485 {offsets = [0, 0], sizes = [4, 64], strides = [1, 1]} : vector<4x256xf32> to vector<4x64xf32>
    %cst_189 = arith.constant 5.000000e-01 : f32
    %487 = vector.broadcast %cst_189 : f32 to vector<4x64xf32>
    %488 = arith.mulf %487, %486 : vector<4x64xf32>
    %489 = math.tanh %488 : vector<4x64xf32>
    %cst_190 = arith.constant 5.000000e-01 : f32
    %490 = vector.broadcast %cst_190 : f32 to vector<4x64xf32>
    %491 = arith.mulf %490, %489 : vector<4x64xf32>
    %cst_191 = arith.constant 5.000000e-01 : f32
    %492 = vector.broadcast %cst_191 : f32 to vector<4x64xf32>
    %493 = arith.addf %491, %492 : vector<4x64xf32>
    %494 = vector.extract_strided_slice %485 {offsets = [0, 64], sizes = [4, 64], strides = [1, 1]} : vector<4x256xf32> to vector<4x64xf32>
    %cst_192 = arith.constant 5.000000e-01 : f32
    %495 = vector.broadcast %cst_192 : f32 to vector<4x64xf32>
    %496 = arith.mulf %495, %494 : vector<4x64xf32>
    %497 = math.tanh %496 : vector<4x64xf32>
    %cst_193 = arith.constant 5.000000e-01 : f32
    %498 = vector.broadcast %cst_193 : f32 to vector<4x64xf32>
    %499 = arith.mulf %498, %497 : vector<4x64xf32>
    %cst_194 = arith.constant 5.000000e-01 : f32
    %500 = vector.broadcast %cst_194 : f32 to vector<4x64xf32>
    %501 = arith.addf %499, %500 : vector<4x64xf32>
    %502 = vector.extract_strided_slice %485 {offsets = [0, 128], sizes = [4, 64], strides = [1, 1]} : vector<4x256xf32> to vector<4x64xf32>
    %503 = math.tanh %502 : vector<4x64xf32>
    %504 = vector.extract_strided_slice %485 {offsets = [0, 192], sizes = [4, 64], strides = [1, 1]} : vector<4x256xf32> to vector<4x64xf32>
    %cst_195 = arith.constant 5.000000e-01 : f32
    %505 = vector.broadcast %cst_195 : f32 to vector<4x64xf32>
    %506 = arith.mulf %505, %504 : vector<4x64xf32>
    %507 = math.tanh %506 : vector<4x64xf32>
    %cst_196 = arith.constant 5.000000e-01 : f32
    %508 = vector.broadcast %cst_196 : f32 to vector<4x64xf32>
    %509 = arith.mulf %508, %507 : vector<4x64xf32>
    %cst_197 = arith.constant 5.000000e-01 : f32
    %510 = vector.broadcast %cst_197 : f32 to vector<4x64xf32>
    %511 = arith.addf %509, %510 : vector<4x64xf32>
    %512 = arith.mulf %501, %436 : vector<4x64xf32>
    %513 = arith.mulf %493, %503 : vector<4x64xf32>
    %514 = arith.addf %512, %513 : vector<4x64xf32>
    %515 = math.tanh %514 : vector<4x64xf32>
    %516 = arith.mulf %511, %515 : vector<4x64xf32>
    %c0_198 = arith.constant 0 : index
    %c0_199 = arith.constant 0 : index
    %517 = vector.load %arg5[%c0_198, %c0_199] : memref<64x128xf32, #tpu.memory_space<vmem>>, vector<64x128xf32>
    %cst_200 = arith.constant dense<0.000000e+00> : vector<4x128xf32>
    %518 = tpu.matmul %516, %517, %cst_200 {dimension_numbers = #tpu.dot_dimension_numbers<[1], [0], [0], [1], [0, 0, 1, 1], [], []>} : vector<4x64xf32>, vector<64x128xf32>, vector<4x128xf32> -> vector<4x128xf32>
    %c0_201 = arith.constant 0 : index
    %c0_202 = arith.constant 0 : index
    %519 = vector.load %arg6[%c0_201, %c0_202] : memref<32x128xf32, #tpu.memory_space<vmem>>, vector<32x128xf32>
    %cst_203 = arith.constant dense<0.000000e+00> : vector<4x128xf32>
    %520 = tpu.matmul %476, %519, %cst_203 {dimension_numbers = #tpu.dot_dimension_numbers<[1], [0], [0], [1], [0, 0, 1, 1], [], []>} : vector<4x32xf32>, vector<32x128xf32>, vector<4x128xf32> -> vector<4x128xf32>
    %521 = arith.addf %518, %520 : vector<4x128xf32>
    %522 = vector.broadcast %8 : vector<1x128xf32> to vector<4x128xf32>
    %523 = arith.addf %521, %522 : vector<4x128xf32>
    %524 = vector.extract_strided_slice %523 {offsets = [0, 0], sizes = [4, 32], strides = [1, 1]} : vector<4x128xf32> to vector<4x32xf32>
    %cst_204 = arith.constant 5.000000e-01 : f32
    %525 = vector.broadcast %cst_204 : f32 to vector<4x32xf32>
    %526 = arith.mulf %525, %524 : vector<4x32xf32>
    %527 = math.tanh %526 : vector<4x32xf32>
    %cst_205 = arith.constant 5.000000e-01 : f32
    %528 = vector.broadcast %cst_205 : f32 to vector<4x32xf32>
    %529 = arith.mulf %528, %527 : vector<4x32xf32>
    %cst_206 = arith.constant 5.000000e-01 : f32
    %530 = vector.broadcast %cst_206 : f32 to vector<4x32xf32>
    %531 = arith.addf %529, %530 : vector<4x32xf32>
    %532 = vector.extract_strided_slice %523 {offsets = [0, 32], sizes = [4, 32], strides = [1, 1]} : vector<4x128xf32> to vector<4x32xf32>
    %cst_207 = arith.constant 5.000000e-01 : f32
    %533 = vector.broadcast %cst_207 : f32 to vector<4x32xf32>
    %534 = arith.mulf %533, %532 : vector<4x32xf32>
    %535 = math.tanh %534 : vector<4x32xf32>
    %cst_208 = arith.constant 5.000000e-01 : f32
    %536 = vector.broadcast %cst_208 : f32 to vector<4x32xf32>
    %537 = arith.mulf %536, %535 : vector<4x32xf32>
    %cst_209 = arith.constant 5.000000e-01 : f32
    %538 = vector.broadcast %cst_209 : f32 to vector<4x32xf32>
    %539 = arith.addf %537, %538 : vector<4x32xf32>
    %540 = vector.extract_strided_slice %523 {offsets = [0, 64], sizes = [4, 32], strides = [1, 1]} : vector<4x128xf32> to vector<4x32xf32>
    %541 = math.tanh %540 : vector<4x32xf32>
    %542 = vector.extract_strided_slice %523 {offsets = [0, 96], sizes = [4, 32], strides = [1, 1]} : vector<4x128xf32> to vector<4x32xf32>
    %cst_210 = arith.constant 5.000000e-01 : f32
    %543 = vector.broadcast %cst_210 : f32 to vector<4x32xf32>
    %544 = arith.mulf %543, %542 : vector<4x32xf32>
    %545 = math.tanh %544 : vector<4x32xf32>
    %cst_211 = arith.constant 5.000000e-01 : f32
    %546 = vector.broadcast %cst_211 : f32 to vector<4x32xf32>
    %547 = arith.mulf %546, %545 : vector<4x32xf32>
    %cst_212 = arith.constant 5.000000e-01 : f32
    %548 = vector.broadcast %cst_212 : f32 to vector<4x32xf32>
    %549 = arith.addf %547, %548 : vector<4x32xf32>
    %550 = arith.mulf %539, %474 : vector<4x32xf32>
    %551 = arith.mulf %531, %541 : vector<4x32xf32>
    %552 = arith.addf %550, %551 : vector<4x32xf32>
    %553 = math.tanh %552 : vector<4x32xf32>
    %554 = arith.mulf %549, %553 : vector<4x32xf32>
    %c6_i32 = arith.constant 6 : i32
    %555 = vector.broadcast %c6_i32 : i32 to vector<4x1xi32>
    %556 = arith.cmpi eq, %7, %555 : vector<4x1xi32>
    %557 = vector.shape_cast %556 : vector<4x1xi1> to vector<4x1xi1>
    %558 = vector.broadcast %557 : vector<4x1xi1> to vector<4x32xi1>
    %559 = arith.select %558, %554, %481 : vector<4x32xi1>, vector<4x32xf32>
    %c28 = arith.constant 28 : index
    %c0_213 = arith.constant 0 : index
    %560 = vector.load %arg13[%c28, %c0_213] : memref<32x256xf32, #tpu.memory_space<vmem>>, vector<4x256xf32>
    %c0_214 = arith.constant 0 : index
    %c0_215 = arith.constant 0 : index
    %561 = vector.load %arg4[%c0_214, %c0_215] : memref<64x256xf32, #tpu.memory_space<vmem>>, vector<64x256xf32>
    %cst_216 = arith.constant dense<0.000000e+00> : vector<4x256xf32>
    %562 = tpu.matmul %516, %561, %cst_216 {dimension_numbers = #tpu.dot_dimension_numbers<[1], [0], [0], [1], [0, 0, 1, 1], [], []>} : vector<4x64xf32>, vector<64x256xf32>, vector<4x256xf32> -> vector<4x256xf32>
    %563 = arith.addf %560, %562 : vector<4x256xf32>
    %564 = vector.extract_strided_slice %563 {offsets = [0, 0], sizes = [4, 64], strides = [1, 1]} : vector<4x256xf32> to vector<4x64xf32>
    %cst_217 = arith.constant 5.000000e-01 : f32
    %565 = vector.broadcast %cst_217 : f32 to vector<4x64xf32>
    %566 = arith.mulf %565, %564 : vector<4x64xf32>
    %567 = math.tanh %566 : vector<4x64xf32>
    %cst_218 = arith.constant 5.000000e-01 : f32
    %568 = vector.broadcast %cst_218 : f32 to vector<4x64xf32>
    %569 = arith.mulf %568, %567 : vector<4x64xf32>
    %cst_219 = arith.constant 5.000000e-01 : f32
    %570 = vector.broadcast %cst_219 : f32 to vector<4x64xf32>
    %571 = arith.addf %569, %570 : vector<4x64xf32>
    %572 = vector.extract_strided_slice %563 {offsets = [0, 64], sizes = [4, 64], strides = [1, 1]} : vector<4x256xf32> to vector<4x64xf32>
    %cst_220 = arith.constant 5.000000e-01 : f32
    %573 = vector.broadcast %cst_220 : f32 to vector<4x64xf32>
    %574 = arith.mulf %573, %572 : vector<4x64xf32>
    %575 = math.tanh %574 : vector<4x64xf32>
    %cst_221 = arith.constant 5.000000e-01 : f32
    %576 = vector.broadcast %cst_221 : f32 to vector<4x64xf32>
    %577 = arith.mulf %576, %575 : vector<4x64xf32>
    %cst_222 = arith.constant 5.000000e-01 : f32
    %578 = vector.broadcast %cst_222 : f32 to vector<4x64xf32>
    %579 = arith.addf %577, %578 : vector<4x64xf32>
    %580 = vector.extract_strided_slice %563 {offsets = [0, 128], sizes = [4, 64], strides = [1, 1]} : vector<4x256xf32> to vector<4x64xf32>
    %581 = math.tanh %580 : vector<4x64xf32>
    %582 = vector.extract_strided_slice %563 {offsets = [0, 192], sizes = [4, 64], strides = [1, 1]} : vector<4x256xf32> to vector<4x64xf32>
    %cst_223 = arith.constant 5.000000e-01 : f32
    %583 = vector.broadcast %cst_223 : f32 to vector<4x64xf32>
    %584 = arith.mulf %583, %582 : vector<4x64xf32>
    %585 = math.tanh %584 : vector<4x64xf32>
    %cst_224 = arith.constant 5.000000e-01 : f32
    %586 = vector.broadcast %cst_224 : f32 to vector<4x64xf32>
    %587 = arith.mulf %586, %585 : vector<4x64xf32>
    %cst_225 = arith.constant 5.000000e-01 : f32
    %588 = vector.broadcast %cst_225 : f32 to vector<4x64xf32>
    %589 = arith.addf %587, %588 : vector<4x64xf32>
    %590 = arith.mulf %579, %514 : vector<4x64xf32>
    %591 = arith.mulf %571, %581 : vector<4x64xf32>
    %592 = arith.addf %590, %591 : vector<4x64xf32>
    %593 = math.tanh %592 : vector<4x64xf32>
    %594 = arith.mulf %589, %593 : vector<4x64xf32>
    %c0_226 = arith.constant 0 : index
    %c0_227 = arith.constant 0 : index
    %595 = vector.load %arg5[%c0_226, %c0_227] : memref<64x128xf32, #tpu.memory_space<vmem>>, vector<64x128xf32>
    %cst_228 = arith.constant dense<0.000000e+00> : vector<4x128xf32>
    %596 = tpu.matmul %594, %595, %cst_228 {dimension_numbers = #tpu.dot_dimension_numbers<[1], [0], [0], [1], [0, 0, 1, 1], [], []>} : vector<4x64xf32>, vector<64x128xf32>, vector<4x128xf32> -> vector<4x128xf32>
    %c0_229 = arith.constant 0 : index
    %c0_230 = arith.constant 0 : index
    %597 = vector.load %arg6[%c0_229, %c0_230] : memref<32x128xf32, #tpu.memory_space<vmem>>, vector<32x128xf32>
    %cst_231 = arith.constant dense<0.000000e+00> : vector<4x128xf32>
    %598 = tpu.matmul %554, %597, %cst_231 {dimension_numbers = #tpu.dot_dimension_numbers<[1], [0], [0], [1], [0, 0, 1, 1], [], []>} : vector<4x32xf32>, vector<32x128xf32>, vector<4x128xf32> -> vector<4x128xf32>
    %599 = arith.addf %596, %598 : vector<4x128xf32>
    %600 = vector.broadcast %8 : vector<1x128xf32> to vector<4x128xf32>
    %601 = arith.addf %599, %600 : vector<4x128xf32>
    %602 = vector.extract_strided_slice %601 {offsets = [0, 0], sizes = [4, 32], strides = [1, 1]} : vector<4x128xf32> to vector<4x32xf32>
    %cst_232 = arith.constant 5.000000e-01 : f32
    %603 = vector.broadcast %cst_232 : f32 to vector<4x32xf32>
    %604 = arith.mulf %603, %602 : vector<4x32xf32>
    %605 = math.tanh %604 : vector<4x32xf32>
    %cst_233 = arith.constant 5.000000e-01 : f32
    %606 = vector.broadcast %cst_233 : f32 to vector<4x32xf32>
    %607 = arith.mulf %606, %605 : vector<4x32xf32>
    %cst_234 = arith.constant 5.000000e-01 : f32
    %608 = vector.broadcast %cst_234 : f32 to vector<4x32xf32>
    %609 = arith.addf %607, %608 : vector<4x32xf32>
    %610 = vector.extract_strided_slice %601 {offsets = [0, 32], sizes = [4, 32], strides = [1, 1]} : vector<4x128xf32> to vector<4x32xf32>
    %cst_235 = arith.constant 5.000000e-01 : f32
    %611 = vector.broadcast %cst_235 : f32 to vector<4x32xf32>
    %612 = arith.mulf %611, %610 : vector<4x32xf32>
    %613 = math.tanh %612 : vector<4x32xf32>
    %cst_236 = arith.constant 5.000000e-01 : f32
    %614 = vector.broadcast %cst_236 : f32 to vector<4x32xf32>
    %615 = arith.mulf %614, %613 : vector<4x32xf32>
    %cst_237 = arith.constant 5.000000e-01 : f32
    %616 = vector.broadcast %cst_237 : f32 to vector<4x32xf32>
    %617 = arith.addf %615, %616 : vector<4x32xf32>
    %618 = vector.extract_strided_slice %601 {offsets = [0, 64], sizes = [4, 32], strides = [1, 1]} : vector<4x128xf32> to vector<4x32xf32>
    %619 = math.tanh %618 : vector<4x32xf32>
    %620 = vector.extract_strided_slice %601 {offsets = [0, 96], sizes = [4, 32], strides = [1, 1]} : vector<4x128xf32> to vector<4x32xf32>
    %cst_238 = arith.constant 5.000000e-01 : f32
    %621 = vector.broadcast %cst_238 : f32 to vector<4x32xf32>
    %622 = arith.mulf %621, %620 : vector<4x32xf32>
    %623 = math.tanh %622 : vector<4x32xf32>
    %cst_239 = arith.constant 5.000000e-01 : f32
    %624 = vector.broadcast %cst_239 : f32 to vector<4x32xf32>
    %625 = arith.mulf %624, %623 : vector<4x32xf32>
    %cst_240 = arith.constant 5.000000e-01 : f32
    %626 = vector.broadcast %cst_240 : f32 to vector<4x32xf32>
    %627 = arith.addf %625, %626 : vector<4x32xf32>
    %628 = arith.mulf %617, %552 : vector<4x32xf32>
    %629 = arith.mulf %609, %619 : vector<4x32xf32>
    %630 = arith.addf %628, %629 : vector<4x32xf32>
    %631 = math.tanh %630 : vector<4x32xf32>
    %632 = arith.mulf %627, %631 : vector<4x32xf32>
    %c7_i32 = arith.constant 7 : i32
    %633 = vector.broadcast %c7_i32 : i32 to vector<4x1xi32>
    %634 = arith.cmpi eq, %7, %633 : vector<4x1xi32>
    %635 = vector.shape_cast %634 : vector<4x1xi1> to vector<4x1xi1>
    %636 = vector.broadcast %635 : vector<4x1xi1> to vector<4x32xi1>
    %637 = arith.select %636, %632, %559 : vector<4x32xi1>, vector<4x32xf32>
    %c0_241 = arith.constant 0 : index
    %c0_242 = arith.constant 0 : index
    %638 = vector.load %arg8[%c0_241, %c0_242] : memref<32x32xf32, #tpu.memory_space<vmem>>, vector<32x32xf32>
    %cst_243 = arith.constant dense<0.000000e+00> : vector<4x32xf32>
    %639 = tpu.matmul %637, %638, %cst_243 {dimension_numbers = #tpu.dot_dimension_numbers<[1], [0], [0], [1], [0, 0, 1, 1], [], []>} : vector<4x32xf32>, vector<32x32xf32>, vector<4x32xf32> -> vector<4x32xf32>
    %c0_244 = arith.constant 0 : index
    %c0_245 = arith.constant 0 : index
    %640 = vector.load %arg9[%c0_244, %c0_245] : memref<1x32xf32, #tpu.memory_space<vmem>>, vector<1x32xf32>
    %641 = vector.broadcast %640 : vector<1x32xf32> to vector<4x32xf32>
    %642 = arith.addf %639, %641 : vector<4x32xf32>
    %cst_246 = arith.constant 0.000000e+00 : f32
    %643 = vector.broadcast %cst_246 : f32 to vector<4x32xf32>
    %644 = arith.maximumf %642, %643 : vector<4x32xf32>
    %c0_247 = arith.constant 0 : index
    %c0_248 = arith.constant 0 : index
    %645 = vector.load %arg10[%c0_247, %c0_248] : memref<32x128xf32, #tpu.memory_space<vmem>>, vector<32x128xf32>
    %cst_249 = arith.constant dense<0.000000e+00> : vector<4x128xf32>
    %646 = tpu.matmul %644, %645, %cst_249 {dimension_numbers = #tpu.dot_dimension_numbers<[1], [0], [0], [1], [0, 0, 1, 1], [], []>} : vector<4x32xf32>, vector<32x128xf32>, vector<4x128xf32> -> vector<4x128xf32>
    %c0_250 = arith.constant 0 : index
    %c0_251 = arith.constant 0 : index
    %647 = vector.load %arg11[%c0_250, %c0_251] : memref<1x128xf32, #tpu.memory_space<vmem>>, vector<1x128xf32>
    %648 = vector.broadcast %647 : vector<1x128xf32> to vector<4x128xf32>
    %649 = arith.addf %646, %648 : vector<4x128xf32>
    %c0_252 = arith.constant 0 : index
    %c0_253 = arith.constant 0 : index
    %650 = vector.load %arg12[%c0_252, %c0_253] : memref<4x128xf32, #tpu.memory_space<vmem>>, vector<4x128xf32>
    tpu.vector_store %arg12[%c0_252, %c0_253], %649 {strides = array<i32>} : memref<4x128xf32, #tpu.memory_space<vmem>>, vector<4x128xf32>,
    return
  }
}

</mosaic_0001>

<llo_original>
// kernel: tpu_custom_call.1
$region0: #{tpu_custom_call.1}
  #allocation0 [shape = 'u32[]', space=smem, size = 0x4, offset = 0x4, fixed_abs, tag = 'smem constant byte address 0x4 - core index']
  #allocation1 [shape = 'u32[72,128]{1,0:T(1,128)}', space=vmem, size = 0x9000, scoped, tag = 'internal scratch']
  #allocation2 [shape = 'f32[32,256]{1,0:T(8,128)}', space=vmem, size = 0x8000, scoped, tag = 'scratch operand']
  %s0 = inlined_call_operand.vmem [shape: s32[4,1], index: 0, kind: input, shape index: {}]
  %s1 = inlined_call_operand.hbm [shape: f32[32,32], index: 1, kind: input, shape index: {}]
  %s2 = inlined_call_operand.hbm [shape: f32[32,256], index: 2, kind: input, shape index: {}]
  %s3 = inlined_call_operand.vmem [shape: f32[1,256], index: 3, kind: input, shape index: {}]
  %s4 = inlined_call_operand.hbm [shape: f32[64,256], index: 4, kind: input, shape index: {}]
  %s5 = inlined_call_operand.hbm [shape: f32[64,128], index: 5, kind: input, shape index: {}]
  %s6 = inlined_call_operand.hbm [shape: f32[32,128], index: 6, kind: input, shape index: {}]
  %s7 = inlined_call_operand.vmem [shape: f32[1,128], index: 7, kind: input, shape index: {}]
  %s8 = inlined_call_operand.hbm [shape: f32[32,32], index: 8, kind: input, shape index: {}]
  %s9 = inlined_call_operand.vmem [shape: f32[1,32], index: 9, kind: input, shape index: {}]
  %s10 = inlined_call_operand.hbm [shape: f32[32,128], index: 10, kind: input, shape index: {}]
  %s11 = inlined_call_operand.vmem [shape: f32[1,128], index: 11, kind: input, shape index: {}]
  %s12 = inlined_call_operand.hbm [shape: f32[4,128], index: 12, kind: output, shape index: {}]
  %s13 = sld [smem:[#allocation0]]
  $region86: #{tpu_custom_call.1} parent=0
    _
  %s15 = ssub.s32 1, %s13
  %s16 = scalar_select 0, %s15, %s13
  $region1: #{tpu_custom_call.1} parent=0
    #allocation3 [shape = 'u8[16384]{0}', space=vmem, size = 0x4000, scoped, tag = 'input window, operand 1, single buffered']
    #allocation4 [shape = 's32[1]{0}', space=sflag, size = 0x4, scoped, tag = 'scoped memory for tpu_custom_call.1']
    #allocation5 [shape = 's32[1]{0}', space=sflag, size = 0x4, scoped, tag = 'scoped memory for tpu_custom_call.1']
    #allocation6 [shape = 'u8[32768]{0}', space=vmem, size = 0x8000, scoped, tag = 'input window, operand 2, single buffered']
    #allocation7 [shape = 's32[1]{0}', space=sflag, size = 0x4, scoped, tag = 'scoped memory for tpu_custom_call.1']
    #allocation8 [shape = 'u8[65536]{0}', space=vmem, size = 0x10000, scoped, tag = 'input window, operand 4, single buffered']
    #allocation9 [shape = 'u8[32768]{0}', space=vmem, size = 0x8000, scoped, tag = 'input window, operand 5, single buffered']
    #allocation10 [shape = 's32[1]{0}', space=sflag, size = 0x4, scoped, tag = 'scoped memory for tpu_custom_call.1']
    #allocation11 [shape = 'u8[16384]{0}', space=vmem, size = 0x4000, scoped, tag = 'input window, operand 6, single buffered']
    #allocation12 [shape = 'u8[16384]{0}', space=vmem, size = 0x4000, scoped, tag = 'input window, operand 8, single buffered']
    #allocation13 [shape = 's32[1]{0}', space=sflag, size = 0x4, scoped, tag = 'scoped memory for tpu_custom_call.1']
    #allocation14 [shape = 'u8[16384]{0}', space=vmem, size = 0x4000, scoped, tag = 'input window, operand 10, single buffered']
    #allocation15 [shape = 'u8[2048]{0}', space=vmem, size = 0x800, scoped, tag = 'output window, operand 0, single buffered']
    %17 = vsyncpa [#allocation4], 0
    %18 = vsyncpa [#allocation7], 0
    %19 = vsyncpa [#allocation10], 0
    %20 = vsyncpa [#allocation13], 0
    %21 = vsyncpa [#allocation5], 0
    // Predicated region
    $region2: #{tpu_custom_call.1} parent=1 // pred_check
      _
    $region3: #{tpu_custom_call.1} parent=1 // pred_check_branch
      %23 = sbr.rel (0) target = $region5
    $region4: #{tpu_custom_call.1} parent=1 // pred_region
      _
    $region5: #{tpu_custom_call.1} parent=1 // pred_fallthru
      _
    // Predicated region
    $region6: #{tpu_custom_call.1} parent=1 // pred_check
      _
    $region7: #{tpu_custom_call.1} parent=1 // pred_check_branch
      %25 = sbr.rel (0) target = $region9
    $region8: #{tpu_custom_call.1} parent=1 // pred_region
      %27 = vsyncadd [#allocation4], 0
      %s28 = sshll.u32 %s1, 4
      %s29 = int_to_ptr.hbm [resolvable:$true] %s28
      %s30 = sshll.u32 [#allocation3], 4
      %s31 = int_to_ptr.vmem [resolvable:$true] %s30
      %36 = dma.hbm_to_vmem [thread:$0]  %s29, 512, %s31, [#allocation4], 128, 128, 8
    $region9: #{tpu_custom_call.1} parent=1 // pred_fallthru
      _
    // Predicated region
    $region10: #{tpu_custom_call.1} parent=1 // pred_check
      _
    $region11: #{tpu_custom_call.1} parent=1 // pred_check_branch
      %38 = sbr.rel (0) target = $region13
    $region12: #{tpu_custom_call.1} parent=1 // pred_region
      %40 = vsyncadd [#allocation7], 0
      %s41 = sshll.u32 %s2, 4
      %s42 = int_to_ptr.hbm [resolvable:$true] %s41
      %s43 = sshll.u32 [#allocation6], 4
      %s44 = int_to_ptr.vmem [resolvable:$true] %s43
      %49 = dma.hbm_to_vmem [thread:$0]  %s42, 1024, %s44, [#allocation7], 256, 256, 16
    $region13: #{tpu_custom_call.1} parent=1 // pred_fallthru
      _
    // Predicated region
    $region14: #{tpu_custom_call.1} parent=1 // pred_check
      _
    $region15: #{tpu_custom_call.1} parent=1 // pred_check_branch
      %51 = sbr.rel (0) target = $region17
    $region16: #{tpu_custom_call.1} parent=1 // pred_region
      _
    $region17: #{tpu_custom_call.1} parent=1 // pred_fallthru
      _
    // Predicated region
    $region18: #{tpu_custom_call.1} parent=1 // pred_check
      _
    $region19: #{tpu_custom_call.1} parent=1 // pred_check_branch
      %53 = sbr.rel (0) target = $region21
    $region20: #{tpu_custom_call.1} parent=1 // pred_region
      %55 = vsyncadd [#allocation7], 0
      %s56 = sshll.u32 %s4, 4
      %s57 = int_to_ptr.hbm [resolvable:$true] %s56
      %s58 = sshll.u32 [#allocation8], 4
      %s59 = int_to_ptr.vmem [resolvable:$true] %s58
      %64 = dma.hbm_to_vmem [thread:$0]  %s57, 2048, %s59, [#allocation7], 256, 256, 16
    $region21: #{tpu_custom_call.1} parent=1 // pred_fallthru
      _
    // Predicated region
    $region22: #{tpu_custom_call.1} parent=1 // pred_check
      _
    $region23: #{tpu_custom_call.1} parent=1 // pred_check_branch
      %66 = sbr.rel (0) target = $region25
    $region24: #{tpu_custom_call.1} parent=1 // pred_region
      %68 = vsyncadd [#allocation10], 0
      %s69 = sshll.u32 %s5, 4
      %s70 = int_to_ptr.hbm [resolvable:$true] %s69
      %s71 = sshll.u32 [#allocation9], 4
      %s72 = int_to_ptr.vmem [resolvable:$true] %s71
      %77 = dma.hbm_to_vmem [thread:$0]  %s70, 1024, %s72, [#allocation10], 128, 128, 8
    $region25: #{tpu_custom_call.1} parent=1 // pred_fallthru
      _
    // Predicated region
    $region26: #{tpu_custom_call.1} parent=1 // pred_check
      _
    $region27: #{tpu_custom_call.1} parent=1 // pred_check_branch
      %79 = sbr.rel (0) target = $region29
    $region28: #{tpu_custom_call.1} parent=1 // pred_region
      %81 = vsyncadd [#allocation10], 0
      %s82 = sshll.u32 %s6, 4
      %s83 = int_to_ptr.hbm [resolvable:$true] %s82
      %s84 = sshll.u32 [#allocation11], 4
      %s85 = int_to_ptr.vmem [resolvable:$true] %s84
      %90 = dma.hbm_to_vmem [thread:$0]  %s83, 512, %s85, [#allocation10], 128, 128, 8
    $region29: #{tpu_custom_call.1} parent=1 // pred_fallthru
      _
    // Predicated region
    $region30: #{tpu_custom_call.1} parent=1 // pred_check
      _
    $region31: #{tpu_custom_call.1} parent=1 // pred_check_branch
      %92 = sbr.rel (0) target = $region33
    $region32: #{tpu_custom_call.1} parent=1 // pred_region
      _
    $region33: #{tpu_custom_call.1} parent=1 // pred_fallthru
      _
    // Predicated region
    $region34: #{tpu_custom_call.1} parent=1 // pred_check
      _
    $region35: #{tpu_custom_call.1} parent=1 // pred_check_branch
      %94 = sbr.rel (0) target = $region37
    $region36: #{tpu_custom_call.1} parent=1 // pred_region
      %96 = vsyncadd [#allocation13], 0
      %s97 = sshll.u32 %s8, 4
      %s98 = int_to_ptr.hbm [resolvable:$true] %s97
      %s99 = sshll.u32 [#allocation12], 4
      %s100 = int_to_ptr.vmem [resolvable:$true] %s99
      %105 = dma.hbm_to_vmem [thread:$0]  %s98, 512, %s100, [#allocation13], 128, 128, 8
    $region37: #{tpu_custom_call.1} parent=1 // pred_fallthru
      _
    // Predicated region
    $region38: #{tpu_custom_call.1} parent=1 // pred_check
      _
    $region39: #{tpu_custom_call.1} parent=1 // pred_check_branch
      %107 = sbr.rel (0) target = $region41
    $region40: #{tpu_custom_call.1} parent=1 // pred_region
      _
    $region41: #{tpu_custom_call.1} parent=1 // pred_fallthru
      _
    // Predicated region
    $region42: #{tpu_custom_call.1} parent=1 // pred_check
      _
    $region43: #{tpu_custom_call.1} parent=1 // pred_check_branch
      %109 = sbr.rel (0) target = $region45
    $region44: #{tpu_custom_call.1} parent=1 // pred_region
      %111 = vsyncadd [#allocation13], 0
      %s112 = sshll.u32 %s10, 4
      %s113 = int_to_ptr.hbm [resolvable:$true] %s112
      %s114 = sshll.u32 [#allocation14], 4
      %s115 = int_to_ptr.vmem [resolvable:$true] %s114
      %120 = dma.hbm_to_vmem [thread:$0]  %s113, 512, %s115, [#allocation13], 128, 128, 8
    $region45: #{tpu_custom_call.1} parent=1 // pred_fallthru
      _
    // Predicated region
    $region46: #{tpu_custom_call.1} parent=1 // pred_check
      _
    $region47: #{tpu_custom_call.1} parent=1 // pred_check_branch
      %122 = sbr.rel (0) target = $region49
    $region48: #{tpu_custom_call.1} parent=1 // pred_region
      _
    $region49: #{tpu_custom_call.1} parent=1 // pred_fallthru
      _
    // Predicated region
    $region50: #{tpu_custom_call.1} parent=1 // pred_check
      _
    $region51: #{tpu_custom_call.1} parent=1 // pred_check_branch
      %124 = sbr.rel (0) target = $region53
    $region52: #{tpu_custom_call.1} parent=1 // pred_region
      %126 = dma.done [#allocation4], 512
    $region53: #{tpu_custom_call.1} parent=1 // pred_fallthru
      _
    // Predicated region
    $region54: #{tpu_custom_call.1} parent=1 // pred_check
      _
    $region55: #{tpu_custom_call.1} parent=1 // pred_check_branch
      %128 = sbr.rel (0) target = $region57
    $region56: #{tpu_custom_call.1} parent=1 // pred_region
      %130 = dma.done [#allocation7], 1024
    $region57: #{tpu_custom_call.1} parent=1 // pred_fallthru
      _
    // Predicated region
    $region58: #{tpu_custom_call.1} parent=1 // pred_check
      _
    $region59: #{tpu_custom_call.1} parent=1 // pred_check_branch
      %132 = sbr.rel (0) target = $region61
    $region60: #{tpu_custom_call.1} parent=1 // pred_region
      %134 = dma.done [#allocation7], 2048
    $region61: #{tpu_custom_call.1} parent=1 // pred_fallthru
      _
    // Predicated region
    $region62: #{tpu_custom_call.1} parent=1 // pred_check
      _
    $region63: #{tpu_custom_call.1} parent=1 // pred_check_branch
      %136 = sbr.rel (0) target = $region65
    $region64: #{tpu_custom_call.1} parent=1 // pred_region
      %138 = dma.done [#allocation10], 1024
    $region65: #{tpu_custom_call.1} parent=1 // pred_fallthru
      _
    // Predicated region
    $region66: #{tpu_custom_call.1} parent=1 // pred_check
      _
    $region67: #{tpu_custom_call.1} parent=1 // pred_check_branch
      %140 = sbr.rel (0) target = $region69
    $region68: #{tpu_custom_call.1} parent=1 // pred_region
      %142 = dma.done [#allocation10], 512
    $region69: #{tpu_custom_call.1} parent=1 // pred_fallthru
      _
    // Predicated region
    $region70: #{tpu_custom_call.1} parent=1 // pred_check
      _
    $region71: #{tpu_custom_call.1} parent=1 // pred_check_branch
      %144 = sbr.rel (0) target = $region73
    $region72: #{tpu_custom_call.1} parent=1 // pred_region
      %146 = dma.done [#allocation13], 512
    $region73: #{tpu_custom_call.1} parent=1 // pred_fallthru
      _
    // Predicated region
    $region74: #{tpu_custom_call.1} parent=1 // pred_check
      _
    $region75: #{tpu_custom_call.1} parent=1 // pred_check_branch
      %148 = sbr.rel (0) target = $region77
    $region76: #{tpu_custom_call.1} parent=1 // pred_region
      %150 = dma.done [#allocation13], 512
    $region77: #{tpu_custom_call.1} parent=1 // pred_fallthru
      _
    %v151 = vld [vmem:[#allocation3] sm:$0xff]
    %v152 = vld [vmem:[#allocation3 + $0x8] sm:$0xff]
    %v153 = vld [vmem:[#allocation3 + $0x10] sm:$0xff]
    %v154 = vld [vmem:[#allocation3 + $0x18] sm:$0xff]
    %v155 = vld [vmem:[#allocation6] sm:$0xff]
    %v156 = vld [vmem:[#allocation6 + $0x8] sm:$0xff]
    %v157 = vld [vmem:[#allocation6 + $0x10] sm:$0xff]
    %v158 = vld [vmem:[#allocation6 + $0x18] sm:$0xff]
    %v159 = vld [vmem:[#allocation6 + $0x20] sm:$0xff]
    %v160 = vld [vmem:[#allocation6 + $0x28] sm:$0xff]
    %v161 = vld [vmem:[#allocation6 + $0x30] sm:$0xff]
    %v162 = vld [vmem:[#allocation6 + $0x38] sm:$0xff]
    %v163 = vld [vmem:[%s3] sm:$0x3]
    %v165 = vperm.slane %v163, 0
    %v166 = vperm.slane %v163, 1
    %vm169 = vcmask 261120
    %v171 = vsel %vm169, %v151, 0
    %v174 = vsel %vm169, %v152, 0
    %v177 = vsel %vm169, %v153, 0
    %v180 = vsel %vm169, %v154, 0
    %182 = vmatpush.msra.mxu0 0.0
    %183 = vmatpush.msra.mxu0 0.0
    %184 = vmatpush.msra.mxu0 0.0
    %185 = vmatpush.msra.mxu0 0.0
    %186 = vmatpush.msra.mxu0 0.0
    %187 = vmatpush.msra.mxu0 0.0
    %188 = vmatpush.msra.mxu0 0.0
    %189 = vmatpush.msra.mxu0 0.0
    %190 = vmatpush.msra.mxu0 0.0
    %191 = vmatpush.msra.mxu0 0.0
    %192 = vmatpush.msra.mxu0 0.0
    %193 = vmatpush.msra.mxu0 0.0
    %194 = vmatpush.msra.mxu0 %v161
    %195 = vmatpush.msra.mxu0 %v159
    %196 = vmatpush.msra.mxu0 %v157
    %197 = vmatpush.msra.mxu0 %v155
    %198 = vmatmul.f32.gmra.mxu0 %v171
    %v199 = vpop.f32.mrf.mxu0
    %v200 = vadd.f32 %v165, %v199
    %201 = vmatmul.f32.gmra.mxu0 %v174
    %v202 = vpop.f32.mrf.mxu0
    %v203 = vadd.f32 %v165, %v202
    %204 = vmatmul.f32.gmra.mxu0 %v177
    %v205 = vpop.f32.mrf.mxu0
    %v206 = vadd.f32 %v165, %v205
    %207 = vmatmul.f32.gmra.mxu0 %v180
    %v208 = vpop.f32.mrf.mxu0
    %v209 = vadd.f32 %v165, %v208
    %210 = vdwg.mxu0
    %211 = vmatpush.msra.mxu0 0.0
    %212 = vmatpush.msra.mxu0 0.0
    %213 = vmatpush.msra.mxu0 0.0
    %214 = vmatpush.msra.mxu0 0.0
    %215 = vmatpush.msra.mxu0 0.0
    %216 = vmatpush.msra.mxu0 0.0
    %217 = vmatpush.msra.mxu0 0.0
    %218 = vmatpush.msra.mxu0 0.0
    %219 = vmatpush.msra.mxu0 0.0
    %220 = vmatpush.msra.mxu0 0.0
    %221 = vmatpush.msra.mxu0 0.0
    %222 = vmatpush.msra.mxu0 0.0
    %223 = vmatpush.msra.mxu0 %v162
    %224 = vmatpush.msra.mxu0 %v160
    %225 = vmatpush.msra.mxu0 %v158
    %226 = vmatpush.msra.mxu0 %v156
    %227 = vmatmul.f32.gmra.mxu0 %v171
    %v228 = vpop.f32.mrf.mxu0
    %v229 = vadd.f32 %v166, %v228
    %230 = vmatmul.f32.gmra.mxu0 %v174
    %v231 = vpop.f32.mrf.mxu0
    %v232 = vadd.f32 %v166, %v231
    %233 = vmatmul.f32.gmra.mxu0 %v177
    %v234 = vpop.f32.mrf.mxu0
    %v235 = vadd.f32 %v166, %v234
    %236 = vmatmul.f32.gmra.mxu0 %v180
    %v237 = vpop.f32.mrf.mxu0
    %v238 = vadd.f32 %v166, %v237
    %239 = vdwg.mxu0
    %240 = vst [vmem:[#allocation2] sm:$0xff] %v200
    %241 = vst [vmem:[#allocation2 + $0x8] sm:$0xff] %v229
    %242 = vst [vmem:[#allocation2 + $0x10] sm:$0xff] %v203
    %243 = vst [vmem:[#allocation2 + $0x18] sm:$0xff] %v232
    %244 = vst [vmem:[#allocation2 + $0x20] sm:$0xff] %v206
    %245 = vst [vmem:[#allocation2 + $0x28] sm:$0xff] %v235
    %246 = vst [vmem:[#allocation2 + $0x30] sm:$0xff] %v209
    %247 = vst [vmem:[#allocation2 + $0x38] sm:$0xff] %v238
    %v248 = vld [vmem:[%s0] sm:$0xf]
    %v249 = vld [vmem:[%s7] sm:$0x1]
    %v250 = vld [vmem:[#allocation2] sm:$0xf]
    %v251 = vld [vmem:[#allocation2 + $0x8] sm:$0xf]
    %v252 = vld [vmem:[#allocation8] sm:$0xff]
    %v253 = vld [vmem:[#allocation8 + $0x8] sm:$0xff]
    %v254 = vld [vmem:[#allocation8 + $0x10] sm:$0xff]
    %v255 = vld [vmem:[#allocation8 + $0x18] sm:$0xff]
    %v256 = vld [vmem:[#allocation8 + $0x20] sm:$0xff]
    %v257 = vld [vmem:[#allocation8 + $0x28] sm:$0xff]
    %v258 = vld [vmem:[#allocation8 + $0x30] sm:$0xff]
    %v259 = vld [vmem:[#allocation8 + $0x38] sm:$0xff]
    %v260 = vld [vmem:[#allocation8 + $0x40] sm:$0xff]
    %v261 = vld [vmem:[#allocation8 + $0x48] sm:$0xff]
    %v262 = vld [vmem:[#allocation8 + $0x50] sm:$0xff]
    %v263 = vld [vmem:[#allocation8 + $0x58] sm:$0xff]
    %v264 = vld [vmem:[#allocation8 + $0x60] sm:$0xff]
    %v265 = vld [vmem:[#allocation8 + $0x68] sm:$0xff]
    %v266 = vld [vmem:[#allocation8 + $0x70] sm:$0xff]
    %v267 = vld [vmem:[#allocation8 + $0x78] sm:$0xff]
    %vm268 = vcmask 523264
    %v270 = vsel %vm268, 0.0, 0
    %272 = vmatpush.msra.mxu0 0.0
    %273 = vmatpush.msra.mxu0 0.0
    %274 = vmatpush.msra.mxu0 0.0
    %275 = vmatpush.msra.mxu0 0.0
    %276 = vmatpush.msra.mxu0 0.0
    %277 = vmatpush.msra.mxu0 0.0
    %278 = vmatpush.msra.mxu0 0.0
    %279 = vmatpush.msra.mxu0 0.0
    %280 = vmatpush.msra.mxu0 %v266
    %281 = vmatpush.msra.mxu0 %v264
    %282 = vmatpush.msra.mxu0 %v262
    %283 = vmatpush.msra.mxu0 %v260
    %284 = vmatpush.msra.mxu0 %v258
    %285 = vmatpush.msra.mxu0 %v256
    %286 = vmatpush.msra.mxu0 %v254
    %287 = vmatpush.msra.mxu0 %v252
    %288 = vmatmul.f32.gmra.mxu0 %v270
    %v289 = vpop.f32.mrf.mxu0
    %v290 = vadd.f32 0.0, %v289
    %291 = vdwg.mxu0
    %292 = vmatpush.msra.mxu0 0.0
    %293 = vmatpush.msra.mxu0 0.0
    %294 = vmatpush.msra.mxu0 0.0
    %295 = vmatpush.msra.mxu0 0.0
    %296 = vmatpush.msra.mxu0 0.0
    %297 = vmatpush.msra.mxu0 0.0
    %298 = vmatpush.msra.mxu0 0.0
    %299 = vmatpush.msra.mxu0 0.0
    %300 = vmatpush.msra.mxu0 %v267
    %301 = vmatpush.msra.mxu0 %v265
    %302 = vmatpush.msra.mxu0 %v263
    %303 = vmatpush.msra.mxu0 %v261
    %304 = vmatpush.msra.mxu0 %v259
    %305 = vmatpush.msra.mxu0 %v257
    %306 = vmatpush.msra.mxu0 %v255
    %307 = vmatpush.msra.mxu0 %v253
    %308 = vmatmul.f32.gmra.mxu0 %v270
    %v309 = vpop.f32.mrf.mxu0
    %v310 = vadd.f32 0.0, %v309
    %311 = vdwg.mxu0
    %v312 = vadd.f32 %v250, %v290
    %v313 = vadd.f32 %v251, %v310
    %v314 = vmul.f32 %v312, 0.5
    %v315 = vtanh.pop %v314
    %v316 = vmul.f32 %v315, 0.5
    %v317 = vadd.f32 %v316, 0.5
    %v318 = vtanh.pop %v313
    %v319 = vmul.f32 %v313, 0.5
    %v320 = vtanh.pop %v319
    %v321 = vmul.f32 %v320, 0.5
    %v322 = vadd.f32 %v321, 0.5
    %v323 = vmul.f32 %v317, 0.0
    %v324 = vmul.f32 %v317, %v318
    %326 = vrot.lane.b32.xlu0 %v324, 64
    %v327 = vpop.permute.xlu0 %326
    %v329 = vadd.f32 %v323, %v327
    %v330 = vtanh.pop %v329
    %v331 = vmul.f32 %v322, %v330
    %v332 = vld [vmem:[#allocation9] sm:$0xff]
    %v333 = vld [vmem:[#allocation9 + $0x8] sm:$0xff]
    %v334 = vld [vmem:[#allocation9 + $0x10] sm:$0xff]
    %v335 = vld [vmem:[#allocation9 + $0x18] sm:$0xff]
    %v336 = vld [vmem:[#allocation9 + $0x20] sm:$0xff]
    %v337 = vld [vmem:[#allocation9 + $0x28] sm:$0xff]
    %v338 = vld [vmem:[#allocation9 + $0x30] sm:$0xff]
    %v339 = vld [vmem:[#allocation9 + $0x38] sm:$0xff]
    %v340 = vld [vmem:[#allocation11] sm:$0xff]
    %v341 = vld [vmem:[#allocation11 + $0x8] sm:$0xff]
    %v342 = vld [vmem:[#allocation11 + $0x10] sm:$0xff]
    %v343 = vld [vmem:[#allocation11 + $0x18] sm:$0xff]
    %v344 = vsel %vm169, 0.0, 0
    %346 = vmatpush.msra.mxu0 0.0
    %347 = vmatpush.msra.mxu0 0.0
    %348 = vmatpush.msra.mxu0 0.0
    %349 = vmatpush.msra.mxu0 0.0
    %350 = vmatpush.msra.mxu0 0.0
    %351 = vmatpush.msra.mxu0 0.0
    %352 = vmatpush.msra.mxu0 0.0
    %353 = vmatpush.msra.mxu0 0.0
    %354 = vmatpush.msra.mxu0 0.0
    %355 = vmatpush.msra.mxu0 0.0
    %356 = vmatpush.msra.mxu0 0.0
    %357 = vmatpush.msra.mxu0 0.0
    %358 = vmatpush.msra.mxu0 %v343
    %359 = vmatpush.msra.mxu0 %v342
    %360 = vmatpush.msra.mxu0 %v341
    %361 = vmatpush.msra.mxu0 %v340
    %362 = vmatmul.f32.gmra.mxu0 %v344
    %v363 = vpop.f32.mrf.mxu0
    %v364 = vadd.f32 0.0, %v363
    %365 = vdwg.mxu0
    %367 = vrot.lane.b32.xlu0 %v331, 64
    %v368 = vpop.permute.xlu0 %367
    %v369 = vsel %vm268, %v368, 0
    %371 = vmatpush.msra.mxu0 0.0
    %372 = vmatpush.msra.mxu0 0.0
    %373 = vmatpush.msra.mxu0 0.0
    %374 = vmatpush.msra.mxu0 0.0
    %375 = vmatpush.msra.mxu0 0.0
    %376 = vmatpush.msra.mxu0 0.0
    %377 = vmatpush.msra.mxu0 0.0
    %378 = vmatpush.msra.mxu0 0.0
    %379 = vmatpush.msra.mxu0 %v339
    %380 = vmatpush.msra.mxu0 %v338
    %381 = vmatpush.msra.mxu0 %v337
    %382 = vmatpush.msra.mxu0 %v336
    %383 = vmatpush.msra.mxu0 %v335
    %384 = vmatpush.msra.mxu0 %v334
    %385 = vmatpush.msra.mxu0 %v333
    %386 = vmatpush.msra.mxu0 %v332
    %387 = vmatmul.f32.gmra.mxu0 %v369
    %v388 = vpop.f32.mrf.mxu0
    %v389 = vadd.f32 %v364, %v388
    %390 = vdwg.mxu0
    %v392 = vperm.slane %v249, 0
    %v394 = vadd.f32 %v389, %v392
    %v395 = vmul.f32 %v394, 0.5
    %v396 = vtanh.pop %v395
    %v397 = vmul.f32 %v396, 0.5
    %v398 = vadd.f32 %v397, 0.5
    %v399 = vtanh.pop %v394
    %v400 = vmul.f32 %v398, 0.0
    %402 = vrot.lane.b32.xlu0 %v399, 64
    %v403 = vpop.permute.xlu0 %402
    %v405 = vmul.f32 %v398, %v403
    %407 = vrot.lane.b32.xlu0 %v405, 32
    %v408 = vpop.permute.xlu0 %407
    %v410 = vadd.f32 %v400, %v408
    %v411 = vtanh.pop %v410
    %413 = vrot.lane.b32.xlu0 %v411, 64
    %v414 = vpop.permute.xlu0 %413
    %v416 = vmul.f32 %v398, %v414
    %vm417 = vcmp.eq.s32.totalorder %v248, 0
    %v418 = vsel %vm417, 1, 0
    %419 = vset.pattern.permute.xlu0 0
    %420 = vperm.xlu0 %419, %v418
    %v421 = vpop.permute.xlu0 %420
    %vm422 = vcmp.eq.s32.totalorder %v421, 1
    %v423 = vsel %vm422, %v416, 0.0
    %v424 = vld [vmem:[#allocation2] sm:$0xf0]
    %v425 = vld [vmem:[#allocation2 + $0x8] sm:$0xf0]
    %426 = vmatpush.msra.mxu0 0.0
    %427 = vmatpush.msra.mxu0 0.0
    %428 = vmatpush.msra.mxu0 0.0
    %429 = vmatpush.msra.mxu0 0.0
    %430 = vmatpush.msra.mxu0 0.0
    %431 = vmatpush.msra.mxu0 0.0
    %432 = vmatpush.msra.mxu0 0.0
    %433 = vmatpush.msra.mxu0 0.0
    %434 = vmatpush.msra.mxu0 %v266
    %435 = vmatpush.msra.mxu0 %v264
    %436 = vmatpush.msra.mxu0 %v262
    %437 = vmatpush.msra.mxu0 %v260
    %438 = vmatpush.msra.mxu0 %v258
    %439 = vmatpush.msra.mxu0 %v256
    %440 = vmatpush.msra.mxu0 %v254
    %441 = vmatpush.msra.mxu0 %v252
    %442 = vmatmul.f32.gmra.mxu0 %v369
    %v443 = vpop.f32.mrf.mxu0
    %v444 = vadd.f32 0.0, %v443
    %445 = vdwg.mxu0
    %446 = vmatpush.msra.mxu0 0.0
    %447 = vmatpush.msra.mxu0 0.0
    %448 = vmatpush.msra.mxu0 0.0
    %449 = vmatpush.msra.mxu0 0.0
    %450 = vmatpush.msra.mxu0 0.0
    %451 = vmatpush.msra.mxu0 0.0
    %452 = vmatpush.msra.mxu0 0.0
    %453 = vmatpush.msra.mxu0 0.0
    %454 = vmatpush.msra.mxu0 %v267
    %455 = vmatpush.msra.mxu0 %v265
    %456 = vmatpush.msra.mxu0 %v263
    %457 = vmatpush.msra.mxu0 %v261
    %458 = vmatpush.msra.mxu0 %v259
    %459 = vmatpush.msra.mxu0 %v257
    %460 = vmatpush.msra.mxu0 %v255
    %461 = vmatpush.msra.mxu0 %v253
    %462 = vmatmul.f32.gmra.mxu0 %v369
    %v463 = vpop.f32.mrf.mxu0
    %v464 = vadd.f32 0.0, %v463
    %465 = vdwg.mxu0
    %v468 = vrot.slane %v444, 4
    %v469 = vrot.slane %v464, 4
    %v472 = vadd.f32 %v424, %v468
    %v473 = vadd.f32 %v425, %v469
    %v474 = vmul.f32 %v472, 0.5
    %v475 = vtanh.pop %v474
    %v476 = vmul.f32 %v475, 0.5
    %v477 = vadd.f32 %v476, 0.5
    %v478 = vtanh.pop %v473
    %v479 = vmul.f32 %v473, 0.5
    %v480 = vtanh.pop %v479
    %v481 = vmul.f32 %v480, 0.5
    %v482 = vadd.f32 %v481, 0.5
    %v484 = vrot.slane %v329, 4
    %v486 = vmul.f32 %v477, %v484
    %v487 = vmul.f32 %v477, %v478
    %489 = vrot.lane.b32.xlu0 %v487, 64
    %v490 = vpop.permute.xlu0 %489
    %v492 = vadd.f32 %v486, %v490
    %v493 = vtanh.pop %v492
    %v494 = vmul.f32 %v482, %v493
    %496 = vrot.lane.b32.xlu0 %v416, 32
    %v497 = vpop.permute.xlu0 %496
    %v498 = vsel %vm169, %v497, 0
    %500 = vmatpush.msra.mxu0 0.0
    %501 = vmatpush.msra.mxu0 0.0
    %502 = vmatpush.msra.mxu0 0.0
    %503 = vmatpush.msra.mxu0 0.0
    %504 = vmatpush.msra.mxu0 0.0
    %505 = vmatpush.msra.mxu0 0.0
    %506 = vmatpush.msra.mxu0 0.0
    %507 = vmatpush.msra.mxu0 0.0
    %508 = vmatpush.msra.mxu0 0.0
    %509 = vmatpush.msra.mxu0 0.0
    %510 = vmatpush.msra.mxu0 0.0
    %511 = vmatpush.msra.mxu0 0.0
    %512 = vmatpush.msra.mxu0 %v343
    %513 = vmatpush.msra.mxu0 %v342
    %514 = vmatpush.msra.mxu0 %v341
    %515 = vmatpush.msra.mxu0 %v340
    %516 = vmatmul.f32.gmra.mxu0 %v498
    %v517 = vpop.f32.mrf.mxu0
    %v518 = vadd.f32 0.0, %v517
    %519 = vdwg.mxu0
    %v521 = vrot.slane %v494, 4
    %522 = vrot.lane.b32.xlu0 %v521, 64
    %v523 = vpop.permute.xlu0 %522
    %v524 = vsel %vm268, %v523, 0
    %526 = vmatpush.msra.mxu0 0.0
    %527 = vmatpush.msra.mxu0 0.0
    %528 = vmatpush.msra.mxu0 0.0
    %529 = vmatpush.msra.mxu0 0.0
    %530 = vmatpush.msra.mxu0 0.0
    %531 = vmatpush.msra.mxu0 0.0
    %532 = vmatpush.msra.mxu0 0.0
    %533 = vmatpush.msra.mxu0 0.0
    %534 = vmatpush.msra.mxu0 %v339
    %535 = vmatpush.msra.mxu0 %v338
    %536 = vmatpush.msra.mxu0 %v337
    %537 = vmatpush.msra.mxu0 %v336
    %538 = vmatpush.msra.mxu0 %v335
    %539 = vmatpush.msra.mxu0 %v334
    %540 = vmatpush.msra.mxu0 %v333
    %541 = vmatpush.msra.mxu0 %v332
    %542 = vmatmul.f32.gmra.mxu0 %v524
    %v543 = vpop.f32.mrf.mxu0
    %v544 = vadd.f32 %v518, %v543
    %545 = vdwg.mxu0
    %v546 = vadd.f32 %v544, %v392
    %v547 = vmul.f32 %v546, 0.5
    %v548 = vtanh.pop %v547
    %v549 = vmul.f32 %v548, 0.5
    %v550 = vadd.f32 %v549, 0.5
    %v551 = vtanh.pop %v546
    %v552 = vmul.f32 %v550, %v410
    %554 = vrot.lane.b32.xlu0 %v551, 64
    %v555 = vpop.permute.xlu0 %554
    %v557 = vmul.f32 %v550, %v555
    %559 = vrot.lane.b32.xlu0 %v557, 32
    %v560 = vpop.permute.xlu0 %559
    %v562 = vadd.f32 %v552, %v560
    %v563 = vtanh.pop %v562
    %565 = vrot.lane.b32.xlu0 %v563, 64
    %v566 = vpop.permute.xlu0 %565
    %v568 = vmul.f32 %v550, %v566
    %vm569 = vcmp.eq.s32.totalorder %v248, 1
    %v570 = vsel %vm569, 1, 0
    %571 = vset.pattern.permute.xlu0 0
    %572 = vperm.xlu0 %571, %v570
    %v573 = vpop.permute.xlu0 %572
    %vm574 = vcmp.eq.s32.totalorder %v573, 1
    %v575 = vsel %vm574, %v568, %v423
    %v576 = vld [vmem:[#allocation2 + $0x10] sm:$0xf]
    %v577 = vld [vmem:[#allocation2 + $0x18] sm:$0xf]
    %578 = vmatpush.msra.mxu0 0.0
    %579 = vmatpush.msra.mxu0 0.0
    %580 = vmatpush.msra.mxu0 0.0
    %581 = vmatpush.msra.mxu0 0.0
    %582 = vmatpush.msra.mxu0 0.0
    %583 = vmatpush.msra.mxu0 0.0
    %584 = vmatpush.msra.mxu0 0.0
    %585 = vmatpush.msra.mxu0 0.0
    %586 = vmatpush.msra.mxu0 %v266
    %587 = vmatpush.msra.mxu0 %v264
    %588 = vmatpush.msra.mxu0 %v262
    %589 = vmatpush.msra.mxu0 %v260
    %590 = vmatpush.msra.mxu0 %v258
    %591 = vmatpush.msra.mxu0 %v256
    %592 = vmatpush.msra.mxu0 %v254
    %593 = vmatpush.msra.mxu0 %v252
    %594 = vmatmul.f32.gmra.mxu0 %v524
    %v595 = vpop.f32.mrf.mxu0
    %v596 = vadd.f32 0.0, %v595
    %597 = vdwg.mxu0
    %598 = vmatpush.msra.mxu0 0.0
    %599 = vmatpush.msra.mxu0 0.0
    %600 = vmatpush.msra.mxu0 0.0
    %601 = vmatpush.msra.mxu0 0.0
    %602 = vmatpush.msra.mxu0 0.0
    %603 = vmatpush.msra.mxu0 0.0
    %604 = vmatpush.msra.mxu0 0.0
    %605 = vmatpush.msra.mxu0 0.0
    %606 = vmatpush.msra.mxu0 %v267
    %607 = vmatpush.msra.mxu0 %v265
    %608 = vmatpush.msra.mxu0 %v263
    %609 = vmatpush.msra.mxu0 %v261
    %610 = vmatpush.msra.mxu0 %v259
    %611 = vmatpush.msra.mxu0 %v257
    %612 = vmatpush.msra.mxu0 %v255
    %613 = vmatpush.msra.mxu0 %v253
    %614 = vmatmul.f32.gmra.mxu0 %v524
    %v615 = vpop.f32.mrf.mxu0
    %v616 = vadd.f32 0.0, %v615
    %617 = vdwg.mxu0
    %v618 = vadd.f32 %v576, %v596
    %v619 = vadd.f32 %v577, %v616
    %v620 = vmul.f32 %v618, 0.5
    %v621 = vtanh.pop %v620
    %v622 = vmul.f32 %v621, 0.5
    %v623 = vadd.f32 %v622, 0.5
    %v624 = vtanh.pop %v619
    %v625 = vmul.f32 %v619, 0.5
    %v626 = vtanh.pop %v625
    %v627 = vmul.f32 %v626, 0.5
    %v628 = vadd.f32 %v627, 0.5
    %v630 = vrot.slane %v492, 4
    %v632 = vmul.f32 %v623, %v630
    %v633 = vmul.f32 %v623, %v624
    %635 = vrot.lane.b32.xlu0 %v633, 64
    %v636 = vpop.permute.xlu0 %635
    %v638 = vadd.f32 %v632, %v636
    %v639 = vtanh.pop %v638
    %v640 = vmul.f32 %v628, %v639
    %642 = vrot.lane.b32.xlu0 %v568, 32
    %v643 = vpop.permute.xlu0 %642
    %v644 = vsel %vm169, %v643, 0
    %646 = vmatpush.msra.mxu0 0.0
    %647 = vmatpush.msra.mxu0 0.0
    %648 = vmatpush.msra.mxu0 0.0
    %649 = vmatpush.msra.mxu0 0.0
    %650 = vmatpush.msra.mxu0 0.0
    %651 = vmatpush.msra.mxu0 0.0
    %652 = vmatpush.msra.mxu0 0.0
    %653 = vmatpush.msra.mxu0 0.0
    %654 = vmatpush.msra.mxu0 0.0
    %655 = vmatpush.msra.mxu0 0.0
    %656 = vmatpush.msra.mxu0 0.0
    %657 = vmatpush.msra.mxu0 0.0
    %658 = vmatpush.msra.mxu0 %v343
    %659 = vmatpush.msra.mxu0 %v342
    %660 = vmatpush.msra.mxu0 %v341
    %661 = vmatpush.msra.mxu0 %v340
    %662 = vmatmul.f32.gmra.mxu0 %v644
    %v663 = vpop.f32.mrf.mxu0
    %v664 = vadd.f32 0.0, %v663
    %665 = vdwg.mxu0
    %667 = vrot.lane.b32.xlu0 %v640, 64
    %v668 = vpop.permute.xlu0 %667
    %v669 = vsel %vm268, %v668, 0
    %671 = vmatpush.msra.mxu0 0.0
    %672 = vmatpush.msra.mxu0 0.0
    %673 = vmatpush.msra.mxu0 0.0
    %674 = vmatpush.msra.mxu0 0.0
    %675 = vmatpush.msra.mxu0 0.0
    %676 = vmatpush.msra.mxu0 0.0
    %677 = vmatpush.msra.mxu0 0.0
    %678 = vmatpush.msra.mxu0 0.0
    %679 = vmatpush.msra.mxu0 %v339
    %680 = vmatpush.msra.mxu0 %v338
    %681 = vmatpush.msra.mxu0 %v337
    %682 = vmatpush.msra.mxu0 %v336
    %683 = vmatpush.msra.mxu0 %v335
    %684 = vmatpush.msra.mxu0 %v334
    %685 = vmatpush.msra.mxu0 %v333
    %686 = vmatpush.msra.mxu0 %v332
    %687 = vmatmul.f32.gmra.mxu0 %v669
    %v688 = vpop.f32.mrf.mxu0
    %v689 = vadd.f32 %v664, %v688
    %690 = vdwg.mxu0
    %v691 = vadd.f32 %v689, %v392
    %v692 = vmul.f32 %v691, 0.5
    %v693 = vtanh.pop %v692
    %v694 = vmul.f32 %v693, 0.5
    %v695 = vadd.f32 %v694, 0.5
    %v696 = vtanh.pop %v691
    %v697 = vmul.f32 %v695, %v562
    %699 = vrot.lane.b32.xlu0 %v696, 64
    %v700 = vpop.permute.xlu0 %699
    %v702 = vmul.f32 %v695, %v700
    %704 = vrot.lane.b32.xlu0 %v702, 32
    %v705 = vpop.permute.xlu0 %704
    %v707 = vadd.f32 %v697, %v705
    %v708 = vtanh.pop %v707
    %710 = vrot.lane.b32.xlu0 %v708, 64
    %v711 = vpop.permute.xlu0 %710
    %v713 = vmul.f32 %v695, %v711
    %vm714 = vcmp.eq.s32.totalorder %v248, 2
    %v715 = vsel %vm714, 1, 0
    %716 = vset.pattern.permute.xlu0 0
    %717 = vperm.xlu0 %716, %v715
    %v718 = vpop.permute.xlu0 %717
    %vm719 = vcmp.eq.s32.totalorder %v718, 1
    %v720 = vsel %vm719, %v713, %v575
    %v721 = vld [vmem:[#allocation2 + $0x10] sm:$0xf0]
    %v722 = vld [vmem:[#allocation2 + $0x18] sm:$0xf0]
    %723 = vmatpush.msra.mxu0 0.0
    %724 = vmatpush.msra.mxu0 0.0
    %725 = vmatpush.msra.mxu0 0.0
    %726 = vmatpush.msra.mxu0 0.0
    %727 = vmatpush.msra.mxu0 0.0
    %728 = vmatpush.msra.mxu0 0.0
    %729 = vmatpush.msra.mxu0 0.0
    %730 = vmatpush.msra.mxu0 0.0
    %731 = vmatpush.msra.mxu0 %v266
    %732 = vmatpush.msra.mxu0 %v264
    %733 = vmatpush.msra.mxu0 %v262
    %734 = vmatpush.msra.mxu0 %v260
    %735 = vmatpush.msra.mxu0 %v258
    %736 = vmatpush.msra.mxu0 %v256
    %737 = vmatpush.msra.mxu0 %v254
    %738 = vmatpush.msra.mxu0 %v252
    %739 = vmatmul.f32.gmra.mxu0 %v669
    %v740 = vpop.f32.mrf.mxu0
    %v741 = vadd.f32 0.0, %v740
    %742 = vdwg.mxu0
    %743 = vmatpush.msra.mxu0 0.0
    %744 = vmatpush.msra.mxu0 0.0
    %745 = vmatpush.msra.mxu0 0.0
    %746 = vmatpush.msra.mxu0 0.0
    %747 = vmatpush.msra.mxu0 0.0
    %748 = vmatpush.msra.mxu0 0.0
    %749 = vmatpush.msra.mxu0 0.0
    %750 = vmatpush.msra.mxu0 0.0
    %751 = vmatpush.msra.mxu0 %v267
    %752 = vmatpush.msra.mxu0 %v265
    %753 = vmatpush.msra.mxu0 %v263
    %754 = vmatpush.msra.mxu0 %v261
    %755 = vmatpush.msra.mxu0 %v259
    %756 = vmatpush.msra.mxu0 %v257
    %757 = vmatpush.msra.mxu0 %v255
    %758 = vmatpush.msra.mxu0 %v253
    %759 = vmatmul.f32.gmra.mxu0 %v669
    %v760 = vpop.f32.mrf.mxu0
    %v761 = vadd.f32 0.0, %v760
    %762 = vdwg.mxu0
    %v765 = vrot.slane %v741, 4
    %v766 = vrot.slane %v761, 4
    %v769 = vadd.f32 %v721, %v765
    %v770 = vadd.f32 %v722, %v766
    %v771 = vmul.f32 %v769, 0.5
    %v772 = vtanh.pop %v771
    %v773 = vmul.f32 %v772, 0.5
    %v774 = vadd.f32 %v773, 0.5
    %v775 = vtanh.pop %v770
    %v776 = vmul.f32 %v770, 0.5
    %v777 = vtanh.pop %v776
    %v778 = vmul.f32 %v777, 0.5
    %v779 = vadd.f32 %v778, 0.5
    %v781 = vrot.slane %v638, 4
    %v783 = vmul.f32 %v774, %v781
    %v784 = vmul.f32 %v774, %v775
    %786 = vrot.lane.b32.xlu0 %v784, 64
    %v787 = vpop.permute.xlu0 %786
    %v789 = vadd.f32 %v783, %v787
    %v790 = vtanh.pop %v789
    %v791 = vmul.f32 %v779, %v790
    %793 = vrot.lane.b32.xlu0 %v713, 32
    %v794 = vpop.permute.xlu0 %793
    %v795 = vsel %vm169, %v794, 0
    %797 = vmatpush.msra.mxu0 0.0
    %798 = vmatpush.msra.mxu0 0.0
    %799 = vmatpush.msra.mxu0 0.0
    %800 = vmatpush.msra.mxu0 0.0
    %801 = vmatpush.msra.mxu0 0.0
    %802 = vmatpush.msra.mxu0 0.0
    %803 = vmatpush.msra.mxu0 0.0
    %804 = vmatpush.msra.mxu0 0.0
    %805 = vmatpush.msra.mxu0 0.0
    %806 = vmatpush.msra.mxu0 0.0
    %807 = vmatpush.msra.mxu0 0.0
    %808 = vmatpush.msra.mxu0 0.0
    %809 = vmatpush.msra.mxu0 %v343
    %810 = vmatpush.msra.mxu0 %v342
    %811 = vmatpush.msra.mxu0 %v341
    %812 = vmatpush.msra.mxu0 %v340
    %813 = vmatmul.f32.gmra.mxu0 %v795
    %v814 = vpop.f32.mrf.mxu0
    %v815 = vadd.f32 0.0, %v814
    %816 = vdwg.mxu0
    %v818 = vrot.slane %v791, 4
    %819 = vrot.lane.b32.xlu0 %v818, 64
    %v820 = vpop.permute.xlu0 %819
    %v821 = vsel %vm268, %v820, 0
    %823 = vmatpush.msra.mxu0 0.0
    %824 = vmatpush.msra.mxu0 0.0
    %825 = vmatpush.msra.mxu0 0.0
    %826 = vmatpush.msra.mxu0 0.0
    %827 = vmatpush.msra.mxu0 0.0
    %828 = vmatpush.msra.mxu0 0.0
    %829 = vmatpush.msra.mxu0 0.0
    %830 = vmatpush.msra.mxu0 0.0
    %831 = vmatpush.msra.mxu0 %v339
    %832 = vmatpush.msra.mxu0 %v338
    %833 = vmatpush.msra.mxu0 %v337
    %834 = vmatpush.msra.mxu0 %v336
    %835 = vmatpush.msra.mxu0 %v335
    %836 = vmatpush.msra.mxu0 %v334
    %837 = vmatpush.msra.mxu0 %v333
    %838 = vmatpush.msra.mxu0 %v332
    %839 = vmatmul.f32.gmra.mxu0 %v821
    %v840 = vpop.f32.mrf.mxu0
    %v841 = vadd.f32 %v815, %v840
    %842 = vdwg.mxu0
    %v843 = vadd.f32 %v841, %v392
    %v844 = vmul.f32 %v843, 0.5
    %v845 = vtanh.pop %v844
    %v846 = vmul.f32 %v845, 0.5
    %v847 = vadd.f32 %v846, 0.5
    %v848 = vtanh.pop %v843
    %v849 = vmul.f32 %v847, %v707
    %851 = vrot.lane.b32.xlu0 %v848, 64
    %v852 = vpop.permute.xlu0 %851
    %v854 = vmul.f32 %v847, %v852
    %856 = vrot.lane.b32.xlu0 %v854, 32
    %v857 = vpop.permute.xlu0 %856
    %v859 = vadd.f32 %v849, %v857
    %v860 = vtanh.pop %v859
    %862 = vrot.lane.b32.xlu0 %v860, 64
    %v863 = vpop.permute.xlu0 %862
    %v865 = vmul.f32 %v847, %v863
    %vm866 = vcmp.eq.s32.totalorder %v248, 3
    %v867 = vsel %vm866, 1, 0
    %868 = vset.pattern.permute.xlu0 0
    %869 = vperm.xlu0 %868, %v867
    %v870 = vpop.permute.xlu0 %869
    %vm871 = vcmp.eq.s32.totalorder %v870, 1
    %v872 = vsel %vm871, %v865, %v720
    %v873 = vld [vmem:[#allocation2 + $0x20] sm:$0xf]
    %v874 = vld [vmem:[#allocation2 + $0x28] sm:$0xf]
    %875 = vmatpush.msra.mxu0 0.0
    %876 = vmatpush.msra.mxu0 0.0
    %877 = vmatpush.msra.mxu0 0.0
    %878 = vmatpush.msra.mxu0 0.0
    %879 = vmatpush.msra.mxu0 0.0
    %880 = vmatpush.msra.mxu0 0.0
    %881 = vmatpush.msra.mxu0 0.0
    %882 = vmatpush.msra.mxu0 0.0
    %883 = vmatpush.msra.mxu0 %v266
    %884 = vmatpush.msra.mxu0 %v264
    %885 = vmatpush.msra.mxu0 %v262
    %886 = vmatpush.msra.mxu0 %v260
    %887 = vmatpush.msra.mxu0 %v258
    %888 = vmatpush.msra.mxu0 %v256
    %889 = vmatpush.msra.mxu0 %v254
    %890 = vmatpush.msra.mxu0 %v252
    %891 = vmatmul.f32.gmra.mxu0 %v821
    %v892 = vpop.f32.mrf.mxu0
    %v893 = vadd.f32 0.0, %v892
    %894 = vdwg.mxu0
    %895 = vmatpush.msra.mxu0 0.0
    %896 = vmatpush.msra.mxu0 0.0
    %897 = vmatpush.msra.mxu0 0.0
    %898 = vmatpush.msra.mxu0 0.0
    %899 = vmatpush.msra.mxu0 0.0
    %900 = vmatpush.msra.mxu0 0.0
    %901 = vmatpush.msra.mxu0 0.0
    %902 = vmatpush.msra.mxu0 0.0
    %903 = vmatpush.msra.mxu0 %v267
    %904 = vmatpush.msra.mxu0 %v265
    %905 = vmatpush.msra.mxu0 %v263
    %906 = vmatpush.msra.mxu0 %v261
    %907 = vmatpush.msra.mxu0 %v259
    %908 = vmatpush.msra.mxu0 %v257
    %909 = vmatpush.msra.mxu0 %v255
    %910 = vmatpush.msra.mxu0 %v253
    %911 = vmatmul.f32.gmra.mxu0 %v821
    %v912 = vpop.f32.mrf.mxu0
    %v913 = vadd.f32 0.0, %v912
    %914 = vdwg.mxu0
    %v915 = vadd.f32 %v873, %v893
    %v916 = vadd.f32 %v874, %v913
    %v917 = vmul.f32 %v915, 0.5
    %v918 = vtanh.pop %v917
    %v919 = vmul.f32 %v918, 0.5
    %v920 = vadd.f32 %v919, 0.5
    %v921 = vtanh.pop %v916
    %v922 = vmul.f32 %v916, 0.5
    %v923 = vtanh.pop %v922
    %v924 = vmul.f32 %v923, 0.5
    %v925 = vadd.f32 %v924, 0.5
    %v927 = vrot.slane %v789, 4
    %v929 = vmul.f32 %v920, %v927
    %v930 = vmul.f32 %v920, %v921
    %932 = vrot.lane.b32.xlu0 %v930, 64
    %v933 = vpop.permute.xlu0 %932
    %v935 = vadd.f32 %v929, %v933
    %v936 = vtanh.pop %v935
    %v937 = vmul.f32 %v925, %v936
    %939 = vrot.lane.b32.xlu0 %v865, 32
    %v940 = vpop.permute.xlu0 %939
    %v941 = vsel %vm169, %v940, 0
    %943 = vmatpush.msra.mxu0 0.0
    %944 = vmatpush.msra.mxu0 0.0
    %945 = vmatpush.msra.mxu0 0.0
    %946 = vmatpush.msra.mxu0 0.0
    %947 = vmatpush.msra.mxu0 0.0
    %948 = vmatpush.msra.mxu0 0.0
    %949 = vmatpush.msra.mxu0 0.0
    %950 = vmatpush.msra.mxu0 0.0
    %951 = vmatpush.msra.mxu0 0.0
    %952 = vmatpush.msra.mxu0 0.0
    %953 = vmatpush.msra.mxu0 0.0
    %954 = vmatpush.msra.mxu0 0.0
    %955 = vmatpush.msra.mxu0 %v343
    %956 = vmatpush.msra.mxu0 %v342
    %957 = vmatpush.msra.mxu0 %v341
    %958 = vmatpush.msra.mxu0 %v340
    %959 = vmatmul.f32.gmra.mxu0 %v941
    %v960 = vpop.f32.mrf.mxu0
    %v961 = vadd.f32 0.0, %v960
    %962 = vdwg.mxu0
    %964 = vrot.lane.b32.xlu0 %v937, 64
    %v965 = vpop.permute.xlu0 %964
    %v966 = vsel %vm268, %v965, 0
    %968 = vmatpush.msra.mxu0 0.0
    %969 = vmatpush.msra.mxu0 0.0
    %970 = vmatpush.msra.mxu0 0.0
    %971 = vmatpush.msra.mxu0 0.0
    %972 = vmatpush.msra.mxu0 0.0
    %973 = vmatpush.msra.mxu0 0.0
    %974 = vmatpush.msra.mxu0 0.0
    %975 = vmatpush.msra.mxu0 0.0
    %976 = vmatpush.msra.mxu0 %v339
    %977 = vmatpush.msra.mxu0 %v338
    %978 = vmatpush.msra.mxu0 %v337
    %979 = vmatpush.msra.mxu0 %v336
    %980 = vmatpush.msra.mxu0 %v335
    %981 = vmatpush.msra.mxu0 %v334
    %982 = vmatpush.msra.mxu0 %v333
    %983 = vmatpush.msra.mxu0 %v332
    %984 = vmatmul.f32.gmra.mxu0 %v966
    %v985 = vpop.f32.mrf.mxu0
    %v986 = vadd.f32 %v961, %v985
    %987 = vdwg.mxu0
    %v988 = vadd.f32 %v986, %v392
    %v989 = vmul.f32 %v988, 0.5
    %v990 = vtanh.pop %v989
    %v991 = vmul.f32 %v990, 0.5
    %v992 = vadd.f32 %v991, 0.5
    %v993 = vtanh.pop %v988
    %v994 = vmul.f32 %v992, %v859
    %996 = vrot.lane.b32.xlu0 %v993, 64
    %v997 = vpop.permute.xlu0 %996
    %v999 = vmul.f32 %v992, %v997
    %1001 = vrot.lane.b32.xlu0 %v999, 32
    %v1002 = vpop.permute.xlu0 %1001
    %v1004 = vadd.f32 %v994, %v1002
    %v1005 = vtanh.pop %v1004
    %1007 = vrot.lane.b32.xlu0 %v1005, 64
    %v1008 = vpop.permute.xlu0 %1007
    %v1010 = vmul.f32 %v992, %v1008
    %vm1011 = vcmp.eq.s32.totalorder %v248, 4
    %v1012 = vsel %vm1011, 1, 0
    %1013 = vset.pattern.permute.xlu0 0
    %1014 = vperm.xlu0 %1013, %v1012
    %v1015 = vpop.permute.xlu0 %1014
    %vm1016 = vcmp.eq.s32.totalorder %v1015, 1
    %v1017 = vsel %vm1016, %v1010, %v872
    %v1018 = vld [vmem:[#allocation2 + $0x20] sm:$0xf0]
    %v1019 = vld [vmem:[#allocation2 + $0x28] sm:$0xf0]
    %1020 = vmatpush.msra.mxu0 0.0
    %1021 = vmatpush.msra.mxu0 0.0
    %1022 = vmatpush.msra.mxu0 0.0
    %1023 = vmatpush.msra.mxu0 0.0
    %1024 = vmatpush.msra.mxu0 0.0
    %1025 = vmatpush.msra.mxu0 0.0
    %1026 = vmatpush.msra.mxu0 0.0
    %1027 = vmatpush.msra.mxu0 0.0
    %1028 = vmatpush.msra.mxu0 %v266
    %1029 = vmatpush.msra.mxu0 %v264
    %1030 = vmatpush.msra.mxu0 %v262
    %1031 = vmatpush.msra.mxu0 %v260
    %1032 = vmatpush.msra.mxu0 %v258
    %1033 = vmatpush.msra.mxu0 %v256
    %1034 = vmatpush.msra.mxu0 %v254
    %1035 = vmatpush.msra.mxu0 %v252
    %1036 = vmatmul.f32.gmra.mxu0 %v966
    %v1037 = vpop.f32.mrf.mxu0
    %v1038 = vadd.f32 0.0, %v1037
    %1039 = vdwg.mxu0
    %1040 = vmatpush.msra.mxu0 0.0
    %1041 = vmatpush.msra.mxu0 0.0
    %1042 = vmatpush.msra.mxu0 0.0
    %1043 = vmatpush.msra.mxu0 0.0
    %1044 = vmatpush.msra.mxu0 0.0
    %1045 = vmatpush.msra.mxu0 0.0
    %1046 = vmatpush.msra.mxu0 0.0
    %1047 = vmatpush.msra.mxu0 0.0
    %1048 = vmatpush.msra.mxu0 %v267
    %1049 = vmatpush.msra.mxu0 %v265
    %1050 = vmatpush.msra.mxu0 %v263
    %1051 = vmatpush.msra.mxu0 %v261
    %1052 = vmatpush.msra.mxu0 %v259
    %1053 = vmatpush.msra.mxu0 %v257
    %1054 = vmatpush.msra.mxu0 %v255
    %1055 = vmatpush.msra.mxu0 %v253
    %1056 = vmatmul.f32.gmra.mxu0 %v966
    %v1057 = vpop.f32.mrf.mxu0
    %v1058 = vadd.f32 0.0, %v1057
    %1059 = vdwg.mxu0
    %v1062 = vrot.slane %v1038, 4
    %v1063 = vrot.slane %v1058, 4
    %v1066 = vadd.f32 %v1018, %v1062
    %v1067 = vadd.f32 %v1019, %v1063
    %v1068 = vmul.f32 %v1066, 0.5
    %v1069 = vtanh.pop %v1068
    %v1070 = vmul.f32 %v1069, 0.5
    %v1071 = vadd.f32 %v1070, 0.5
    %v1072 = vtanh.pop %v1067
    %v1073 = vmul.f32 %v1067, 0.5
    %v1074 = vtanh.pop %v1073
    %v1075 = vmul.f32 %v1074, 0.5
    %v1076 = vadd.f32 %v1075, 0.5
    %v1078 = vrot.slane %v935, 4
    %v1080 = vmul.f32 %v1071, %v1078
    %v1081 = vmul.f32 %v1071, %v1072
    %1083 = vrot.lane.b32.xlu0 %v1081, 64
    %v1084 = vpop.permute.xlu0 %1083
    %v1086 = vadd.f32 %v1080, %v1084
    %v1087 = vtanh.pop %v1086
    %v1088 = vmul.f32 %v1076, %v1087
    %1090 = vrot.lane.b32.xlu0 %v1010, 32
    %v1091 = vpop.permute.xlu0 %1090
    %v1092 = vsel %vm169, %v1091, 0
    %1094 = vmatpush.msra.mxu0 0.0
    %1095 = vmatpush.msra.mxu0 0.0
    %1096 = vmatpush.msra.mxu0 0.0
    %1097 = vmatpush.msra.mxu0 0.0
    %1098 = vmatpush.msra.mxu0 0.0
    %1099 = vmatpush.msra.mxu0 0.0
    %1100 = vmatpush.msra.mxu0 0.0
    %1101 = vmatpush.msra.mxu0 0.0
    %1102 = vmatpush.msra.mxu0 0.0
    %1103 = vmatpush.msra.mxu0 0.0
    %1104 = vmatpush.msra.mxu0 0.0
    %1105 = vmatpush.msra.mxu0 0.0
    %1106 = vmatpush.msra.mxu0 %v343
    %1107 = vmatpush.msra.mxu0 %v342
    %1108 = vmatpush.msra.mxu0 %v341
    %1109 = vmatpush.msra.mxu0 %v340
    %1110 = vmatmul.f32.gmra.mxu0 %v1092
    %v1111 = vpop.f32.mrf.mxu0
    %v1112 = vadd.f32 0.0, %v1111
    %1113 = vdwg.mxu0
    %v1115 = vrot.slane %v1088, 4
    %1116 = vrot.lane.b32.xlu0 %v1115, 64
    %v1117 = vpop.permute.xlu0 %1116
    %v1118 = vsel %vm268, %v1117, 0
    %1120 = vmatpush.msra.mxu0 0.0
    %1121 = vmatpush.msra.mxu0 0.0
    %1122 = vmatpush.msra.mxu0 0.0
    %1123 = vmatpush.msra.mxu0 0.0
    %1124 = vmatpush.msra.mxu0 0.0
    %1125 = vmatpush.msra.mxu0 0.0
    %1126 = vmatpush.msra.mxu0 0.0
    %1127 = vmatpush.msra.mxu0 0.0
    %1128 = vmatpush.msra.mxu0 %v339
    %1129 = vmatpush.msra.mxu0 %v338
    %1130 = vmatpush.msra.mxu0 %v337
    %1131 = vmatpush.msra.mxu0 %v336
    %1132 = vmatpush.msra.mxu0 %v335
    %1133 = vmatpush.msra.mxu0 %v334
    %1134 = vmatpush.msra.mxu0 %v333
    %1135 = vmatpush.msra.mxu0 %v332
    %1136 = vmatmul.f32.gmra.mxu0 %v1118
    %v1137 = vpop.f32.mrf.mxu0
    %v1138 = vadd.f32 %v1112, %v1137
    %1139 = vdwg.mxu0
    %v1140 = vadd.f32 %v1138, %v392
    %v1141 = vmul.f32 %v1140, 0.5
    %v1142 = vtanh.pop %v1141
    %v1143 = vmul.f32 %v1142, 0.5
    %v1144 = vadd.f32 %v1143, 0.5
    %v1145 = vtanh.pop %v1140
    %v1146 = vmul.f32 %v1144, %v1004
    %1148 = vrot.lane.b32.xlu0 %v1145, 64
    %v1149 = vpop.permute.xlu0 %1148
    %v1151 = vmul.f32 %v1144, %v1149
    %1153 = vrot.lane.b32.xlu0 %v1151, 32
    %v1154 = vpop.permute.xlu0 %1153
    %v1156 = vadd.f32 %v1146, %v1154
    %v1157 = vtanh.pop %v1156
    %1159 = vrot.lane.b32.xlu0 %v1157, 64
    %v1160 = vpop.permute.xlu0 %1159
    %v1162 = vmul.f32 %v1144, %v1160
    %vm1163 = vcmp.eq.s32.totalorder %v248, 5
    %v1164 = vsel %vm1163, 1, 0
    %1165 = vset.pattern.permute.xlu0 0
    %1166 = vperm.xlu0 %1165, %v1164
    %v1167 = vpop.permute.xlu0 %1166
    %vm1168 = vcmp.eq.s32.totalorder %v1167, 1
    %v1169 = vsel %vm1168, %v1162, %v1017
    %v1170 = vld [vmem:[#allocation2 + $0x30] sm:$0xf]
    %v1171 = vld [vmem:[#allocation2 + $0x38] sm:$0xf]
    %1172 = vmatpush.msra.mxu0 0.0
    %1173 = vmatpush.msra.mxu0 0.0
    %1174 = vmatpush.msra.mxu0 0.0
    %1175 = vmatpush.msra.mxu0 0.0
    %1176 = vmatpush.msra.mxu0 0.0
    %1177 = vmatpush.msra.mxu0 0.0
    %1178 = vmatpush.msra.mxu0 0.0
    %1179 = vmatpush.msra.mxu0 0.0
    %1180 = vmatpush.msra.mxu0 %v266
    %1181 = vmatpush.msra.mxu0 %v264
    %1182 = vmatpush.msra.mxu0 %v262
    %1183 = vmatpush.msra.mxu0 %v260
    %1184 = vmatpush.msra.mxu0 %v258
    %1185 = vmatpush.msra.mxu0 %v256
    %1186 = vmatpush.msra.mxu0 %v254
    %1187 = vmatpush.msra.mxu0 %v252
    %1188 = vmatmul.f32.gmra.mxu0 %v1118
    %v1189 = vpop.f32.mrf.mxu0
    %v1190 = vadd.f32 0.0, %v1189
    %1191 = vdwg.mxu0
    %1192 = vmatpush.msra.mxu0 0.0
    %1193 = vmatpush.msra.mxu0 0.0
    %1194 = vmatpush.msra.mxu0 0.0
    %1195 = vmatpush.msra.mxu0 0.0
    %1196 = vmatpush.msra.mxu0 0.0
    %1197 = vmatpush.msra.mxu0 0.0
    %1198 = vmatpush.msra.mxu0 0.0
    %1199 = vmatpush.msra.mxu0 0.0
    %1200 = vmatpush.msra.mxu0 %v267
    %1201 = vmatpush.msra.mxu0 %v265
    %1202 = vmatpush.msra.mxu0 %v263
    %1203 = vmatpush.msra.mxu0 %v261
    %1204 = vmatpush.msra.mxu0 %v259
    %1205 = vmatpush.msra.mxu0 %v257
    %1206 = vmatpush.msra.mxu0 %v255
    %1207 = vmatpush.msra.mxu0 %v253
    %1208 = vmatmul.f32.gmra.mxu0 %v1118
    %v1209 = vpop.f32.mrf.mxu0
    %v1210 = vadd.f32 0.0, %v1209
    %1211 = vdwg.mxu0
    %v1212 = vadd.f32 %v1170, %v1190
    %v1213 = vadd.f32 %v1171, %v1210
    %v1214 = vmul.f32 %v1212, 0.5
    %v1215 = vtanh.pop %v1214
    %v1216 = vmul.f32 %v1215, 0.5
    %v1217 = vadd.f32 %v1216, 0.5
    %v1218 = vtanh.pop %v1213
    %v1219 = vmul.f32 %v1213, 0.5
    %v1220 = vtanh.pop %v1219
    %v1221 = vmul.f32 %v1220, 0.5
    %v1222 = vadd.f32 %v1221, 0.5
    %v1224 = vrot.slane %v1086, 4
    %v1226 = vmul.f32 %v1217, %v1224
    %v1227 = vmul.f32 %v1217, %v1218
    %1229 = vrot.lane.b32.xlu0 %v1227, 64
    %v1230 = vpop.permute.xlu0 %1229
    %v1232 = vadd.f32 %v1226, %v1230
    %v1233 = vtanh.pop %v1232
    %v1234 = vmul.f32 %v1222, %v1233
    %1236 = vrot.lane.b32.xlu0 %v1162, 32
    %v1237 = vpop.permute.xlu0 %1236
    %v1238 = vsel %vm169, %v1237, 0
    %1240 = vmatpush.msra.mxu0 0.0
    %1241 = vmatpush.msra.mxu0 0.0
    %1242 = vmatpush.msra.mxu0 0.0
    %1243 = vmatpush.msra.mxu0 0.0
    %1244 = vmatpush.msra.mxu0 0.0
    %1245 = vmatpush.msra.mxu0 0.0
    %1246 = vmatpush.msra.mxu0 0.0
    %1247 = vmatpush.msra.mxu0 0.0
    %1248 = vmatpush.msra.mxu0 0.0
    %1249 = vmatpush.msra.mxu0 0.0
    %1250 = vmatpush.msra.mxu0 0.0
    %1251 = vmatpush.msra.mxu0 0.0
    %1252 = vmatpush.msra.mxu0 %v343
    %1253 = vmatpush.msra.mxu0 %v342
    %1254 = vmatpush.msra.mxu0 %v341
    %1255 = vmatpush.msra.mxu0 %v340
    %1256 = vmatmul.f32.gmra.mxu0 %v1238
    %v1257 = vpop.f32.mrf.mxu0
    %v1258 = vadd.f32 0.0, %v1257
    %1259 = vdwg.mxu0
    %1261 = vrot.lane.b32.xlu0 %v1234, 64
    %v1262 = vpop.permute.xlu0 %1261
    %v1263 = vsel %vm268, %v1262, 0
    %1265 = vmatpush.msra.mxu0 0.0
    %1266 = vmatpush.msra.mxu0 0.0
    %1267 = vmatpush.msra.mxu0 0.0
    %1268 = vmatpush.msra.mxu0 0.0
    %1269 = vmatpush.msra.mxu0 0.0
    %1270 = vmatpush.msra.mxu0 0.0
    %1271 = vmatpush.msra.mxu0 0.0
    %1272 = vmatpush.msra.mxu0 0.0
    %1273 = vmatpush.msra.mxu0 %v339
    %1274 = vmatpush.msra.mxu0 %v338
    %1275 = vmatpush.msra.mxu0 %v337
    %1276 = vmatpush.msra.mxu0 %v336
    %1277 = vmatpush.msra.mxu0 %v335
    %1278 = vmatpush.msra.mxu0 %v334
    %1279 = vmatpush.msra.mxu0 %v333
    %1280 = vmatpush.msra.mxu0 %v332
    %1281 = vmatmul.f32.gmra.mxu0 %v1263
    %v1282 = vpop.f32.mrf.mxu0
    %v1283 = vadd.f32 %v1258, %v1282
    %1284 = vdwg.mxu0
    %v1285 = vadd.f32 %v1283, %v392
    %v1286 = vmul.f32 %v1285, 0.5
    %v1287 = vtanh.pop %v1286
    %v1288 = vmul.f32 %v1287, 0.5
    %v1289 = vadd.f32 %v1288, 0.5
    %v1290 = vtanh.pop %v1285
    %v1291 = vmul.f32 %v1289, %v1156
    %1293 = vrot.lane.b32.xlu0 %v1290, 64
    %v1294 = vpop.permute.xlu0 %1293
    %v1296 = vmul.f32 %v1289, %v1294
    %1298 = vrot.lane.b32.xlu0 %v1296, 32
    %v1299 = vpop.permute.xlu0 %1298
    %v1301 = vadd.f32 %v1291, %v1299
    %v1302 = vtanh.pop %v1301
    %1304 = vrot.lane.b32.xlu0 %v1302, 64
    %v1305 = vpop.permute.xlu0 %1304
    %v1307 = vmul.f32 %v1289, %v1305
    %vm1308 = vcmp.eq.s32.totalorder %v248, 6
    %v1309 = vsel %vm1308, 1, 0
    %1310 = vset.pattern.permute.xlu0 0
    %1311 = vperm.xlu0 %1310, %v1309
    %v1312 = vpop.permute.xlu0 %1311
    %vm1313 = vcmp.eq.s32.totalorder %v1312, 1
    %v1314 = vsel %vm1313, %v1307, %v1169
    %v1315 = vld [vmem:[#allocation2 + $0x30] sm:$0xf0]
    %v1316 = vld [vmem:[#allocation2 + $0x38] sm:$0xf0]
    %1317 = vmatpush.msra.mxu0 0.0
    %1318 = vmatpush.msra.mxu0 0.0
    %1319 = vmatpush.msra.mxu0 0.0
    %1320 = vmatpush.msra.mxu0 0.0
    %1321 = vmatpush.msra.mxu0 0.0
    %1322 = vmatpush.msra.mxu0 0.0
    %1323 = vmatpush.msra.mxu0 0.0
    %1324 = vmatpush.msra.mxu0 0.0
    %1325 = vmatpush.msra.mxu0 %v266
    %1326 = vmatpush.msra.mxu0 %v264
    %1327 = vmatpush.msra.mxu0 %v262
    %1328 = vmatpush.msra.mxu0 %v260
    %1329 = vmatpush.msra.mxu0 %v258
    %1330 = vmatpush.msra.mxu0 %v256
    %1331 = vmatpush.msra.mxu0 %v254
    %1332 = vmatpush.msra.mxu0 %v252
    %1333 = vmatmul.f32.gmra.mxu0 %v1263
    %v1334 = vpop.f32.mrf.mxu0
    %v1335 = vadd.f32 0.0, %v1334
    %1336 = vdwg.mxu0
    %1337 = vmatpush.msra.mxu0 0.0
    %1338 = vmatpush.msra.mxu0 0.0
    %1339 = vmatpush.msra.mxu0 0.0
    %1340 = vmatpush.msra.mxu0 0.0
    %1341 = vmatpush.msra.mxu0 0.0
    %1342 = vmatpush.msra.mxu0 0.0
    %1343 = vmatpush.msra.mxu0 0.0
    %1344 = vmatpush.msra.mxu0 0.0
    %1345 = vmatpush.msra.mxu0 %v267
    %1346 = vmatpush.msra.mxu0 %v265
    %1347 = vmatpush.msra.mxu0 %v263
    %1348 = vmatpush.msra.mxu0 %v261
    %1349 = vmatpush.msra.mxu0 %v259
    %1350 = vmatpush.msra.mxu0 %v257
    %1351 = vmatpush.msra.mxu0 %v255
    %1352 = vmatpush.msra.mxu0 %v253
    %1353 = vmatmul.f32.gmra.mxu0 %v1263
    %v1354 = vpop.f32.mrf.mxu0
    %v1355 = vadd.f32 0.0, %v1354
    %1356 = vdwg.mxu0
    %v1359 = vrot.slane %v1335, 4
    %v1360 = vrot.slane %v1355, 4
    %v1363 = vadd.f32 %v1315, %v1359
    %v1364 = vadd.f32 %v1316, %v1360
    %v1365 = vmul.f32 %v1363, 0.5
    %v1366 = vtanh.pop %v1365
    %v1367 = vmul.f32 %v1366, 0.5
    %v1368 = vadd.f32 %v1367, 0.5
    %v1369 = vtanh.pop %v1364
    %v1370 = vmul.f32 %v1364, 0.5
    %v1371 = vtanh.pop %v1370
    %v1372 = vmul.f32 %v1371, 0.5
    %v1373 = vadd.f32 %v1372, 0.5
    %v1375 = vrot.slane %v1232, 4
    %v1377 = vmul.f32 %v1368, %v1375
    %v1378 = vmul.f32 %v1368, %v1369
    %1380 = vrot.lane.b32.xlu0 %v1378, 64
    %v1381 = vpop.permute.xlu0 %1380
    %v1383 = vadd.f32 %v1377, %v1381
    %v1384 = vtanh.pop %v1383
    %v1385 = vmul.f32 %v1373, %v1384
    %1387 = vrot.lane.b32.xlu0 %v1307, 32
    %v1388 = vpop.permute.xlu0 %1387
    %v1389 = vsel %vm169, %v1388, 0
    %1391 = vmatpush.msra.mxu0 0.0
    %1392 = vmatpush.msra.mxu0 0.0
    %1393 = vmatpush.msra.mxu0 0.0
    %1394 = vmatpush.msra.mxu0 0.0
    %1395 = vmatpush.msra.mxu0 0.0
    %1396 = vmatpush.msra.mxu0 0.0
    %1397 = vmatpush.msra.mxu0 0.0
    %1398 = vmatpush.msra.mxu0 0.0
    %1399 = vmatpush.msra.mxu0 0.0
    %1400 = vmatpush.msra.mxu0 0.0
    %1401 = vmatpush.msra.mxu0 0.0
    %1402 = vmatpush.msra.mxu0 0.0
    %1403 = vmatpush.msra.mxu0 %v343
    %1404 = vmatpush.msra.mxu0 %v342
    %1405 = vmatpush.msra.mxu0 %v341
    %1406 = vmatpush.msra.mxu0 %v340
    %1407 = vmatmul.f32.gmra.mxu0 %v1389
    %v1408 = vpop.f32.mrf.mxu0
    %v1409 = vadd.f32 0.0, %v1408
    %1410 = vdwg.mxu0
    %v1412 = vrot.slane %v1385, 4
    %1413 = vrot.lane.b32.xlu0 %v1412, 64
    %v1414 = vpop.permute.xlu0 %1413
    %v1415 = vsel %vm268, %v1414, 0
    %1417 = vmatpush.msra.mxu0 0.0
    %1418 = vmatpush.msra.mxu0 0.0
    %1419 = vmatpush.msra.mxu0 0.0
    %1420 = vmatpush.msra.mxu0 0.0
    %1421 = vmatpush.msra.mxu0 0.0
    %1422 = vmatpush.msra.mxu0 0.0
    %1423 = vmatpush.msra.mxu0 0.0
    %1424 = vmatpush.msra.mxu0 0.0
    %1425 = vmatpush.msra.mxu0 %v339
    %1426 = vmatpush.msra.mxu0 %v338
    %1427 = vmatpush.msra.mxu0 %v337
    %1428 = vmatpush.msra.mxu0 %v336
    %1429 = vmatpush.msra.mxu0 %v335
    %1430 = vmatpush.msra.mxu0 %v334
    %1431 = vmatpush.msra.mxu0 %v333
    %1432 = vmatpush.msra.mxu0 %v332
    %1433 = vmatmul.f32.gmra.mxu0 %v1415
    %v1434 = vpop.f32.mrf.mxu0
    %v1435 = vadd.f32 %v1409, %v1434
    %1436 = vdwg.mxu0
    %v1437 = vadd.f32 %v1435, %v392
    %v1438 = vmul.f32 %v1437, 0.5
    %v1439 = vtanh.pop %v1438
    %v1440 = vmul.f32 %v1439, 0.5
    %v1441 = vadd.f32 %v1440, 0.5
    %v1442 = vtanh.pop %v1437
    %v1443 = vmul.f32 %v1441, %v1301
    %1445 = vrot.lane.b32.xlu0 %v1442, 64
    %v1446 = vpop.permute.xlu0 %1445
    %v1448 = vmul.f32 %v1441, %v1446
    %1450 = vrot.lane.b32.xlu0 %v1448, 32
    %v1451 = vpop.permute.xlu0 %1450
    %v1453 = vadd.f32 %v1443, %v1451
    %v1454 = vtanh.pop %v1453
    %1456 = vrot.lane.b32.xlu0 %v1454, 64
    %v1457 = vpop.permute.xlu0 %1456
    %v1459 = vmul.f32 %v1441, %v1457
    %vm1460 = vcmp.eq.s32.totalorder %v248, 7
    %v1461 = vsel %vm1460, 1, 0
    %1462 = vset.pattern.permute.xlu0 0
    %1463 = vperm.xlu0 %1462, %v1461
    %v1464 = vpop.permute.xlu0 %1463
    %vm1465 = vcmp.eq.s32.totalorder %v1464, 1
    %v1466 = vsel %vm1465, %v1459, %v1314
    %v1467 = vld [vmem:[#allocation12] sm:$0xff]
    %v1468 = vld [vmem:[#allocation12 + $0x8] sm:$0xff]
    %v1469 = vld [vmem:[#allocation12 + $0x10] sm:$0xff]
    %v1470 = vld [vmem:[#allocation12 + $0x18] sm:$0xff]
    %v1471 = vld [vmem:[%s9] sm:$0x1]
    %v1473 = vperm.slane %v1471, 0
    %1476 = vrot.lane.b32.xlu0 %v1466, 32
    %v1477 = vpop.permute.xlu0 %1476
    %v1478 = vsel %vm169, %v1477, 0
    %1480 = vmatpush.msra.mxu0 0.0
    %1481 = vmatpush.msra.mxu0 0.0
    %1482 = vmatpush.msra.mxu0 0.0
    %1483 = vmatpush.msra.mxu0 0.0
    %1484 = vmatpush.msra.mxu0 0.0
    %1485 = vmatpush.msra.mxu0 0.0
    %1486 = vmatpush.msra.mxu0 0.0
    %1487 = vmatpush.msra.mxu0 0.0
    %1488 = vmatpush.msra.mxu0 0.0
    %1489 = vmatpush.msra.mxu0 0.0
    %1490 = vmatpush.msra.mxu0 0.0
    %1491 = vmatpush.msra.mxu0 0.0
    %1492 = vmatpush.msra.mxu0 %v1470
    %1493 = vmatpush.msra.mxu0 %v1469
    %1494 = vmatpush.msra.mxu0 %v1468
    %1495 = vmatpush.msra.mxu0 %v1467
    %1496 = vmatmul.f32.gmra.mxu0 %v1478
    %v1497 = vpop.f32.mrf.mxu0
    %v1498 = vadd.f32 %v1473, %v1497
    %1499 = vdwg.mxu0
    %v1500 = vmax.f32 %v1498, 0.0
    %v1501 = vld [vmem:[#allocation14] sm:$0xff]
    %v1502 = vld [vmem:[#allocation14 + $0x8] sm:$0xff]
    %v1503 = vld [vmem:[#allocation14 + $0x10] sm:$0xff]
    %v1504 = vld [vmem:[#allocation14 + $0x18] sm:$0xff]
    %v1505 = vld [vmem:[%s11] sm:$0x1]
    %v1507 = vperm.slane %v1505, 0
    %v1510 = vsel %vm169, %v1500, 0
    %1512 = vmatpush.msra.mxu0 0.0
    %1513 = vmatpush.msra.mxu0 0.0
    %1514 = vmatpush.msra.mxu0 0.0
    %1515 = vmatpush.msra.mxu0 0.0
    %1516 = vmatpush.msra.mxu0 0.0
    %1517 = vmatpush.msra.mxu0 0.0
    %1518 = vmatpush.msra.mxu0 0.0
    %1519 = vmatpush.msra.mxu0 0.0
    %1520 = vmatpush.msra.mxu0 0.0
    %1521 = vmatpush.msra.mxu0 0.0
    %1522 = vmatpush.msra.mxu0 0.0
    %1523 = vmatpush.msra.mxu0 0.0
    %1524 = vmatpush.msra.mxu0 %v1504
    %1525 = vmatpush.msra.mxu0 %v1503
    %1526 = vmatpush.msra.mxu0 %v1502
    %1527 = vmatpush.msra.mxu0 %v1501
    %1528 = vmatmul.f32.gmra.mxu0 %v1510
    %v1529 = vpop.f32.mrf.mxu0
    %v1530 = vadd.f32 %v1507, %v1529
    %1531 = vdwg.mxu0
    %1532 = vst [vmem:[#allocation15] sm:$0xf] %v1530
    // Predicated region
    $region78: #{tpu_custom_call.1} parent=1 // pred_check
      _
    $region79: #{tpu_custom_call.1} parent=1 // pred_check_branch
      %1534 = sbr.rel (0) target = $region81
    $region80: #{tpu_custom_call.1} parent=1 // pred_region
      %1536 = vsyncadd [#allocation5], 0
      %s1538 = sshll.u32 [#allocation15], 4
      %s1539 = int_to_ptr.vmem [resolvable:$true] %s1538
      %s1540 = sshll.u32 %s12, 4
      %s1541 = int_to_ptr.hbm [resolvable:$true] %s1540
      %1543 = dma.vmem_to_hbm [thread:$0]  %s1539, 64, %s1541, [#allocation5]
    $region81: #{tpu_custom_call.1} parent=1 // pred_fallthru
      _
    // Predicated region
    $region82: #{tpu_custom_call.1} parent=1 // pred_check
      _
    $region83: #{tpu_custom_call.1} parent=1 // pred_check_branch
      %1545 = sbr.rel (0) target = $region85
    $region84: #{tpu_custom_call.1} parent=1 // pred_region
      %1547 = dma.done [#allocation5], 64
    $region85: #{tpu_custom_call.1} parent=1 // pred_fallthru
      _
    %1548 = vsyncpa [#allocation4], 1
    %1549 = vsyncpa [#allocation7], 1
    %1550 = vsyncpa [#allocation10], 1
    %1551 = vsyncpa [#allocation13], 1
    %1552 = vsyncpa [#allocation5], 1

</llo_original>
